<compile_context>
chip_gen: v5e
topology: v5e:2x2
jax: 0.10.0
libtpu: 0.0.40
codegen_flags: <defaults>
</compile_context>

<pallas_src>
import functools

import numpy as np
import jax
import jax.numpy as jnp
from jax.experimental import pallas as pl
from jax.experimental.pallas import tpu as pltpu

_EPS = 1e-6  # torch.nn.functional.pairwise_distance default eps


def _round_up(x, m):
    return ((x + m - 1) // m) * m


# ----------------------------------------------------------------------------
# Pallas kernel: sim matmul tile + algebraic triplet distances + hinge + mean
# ----------------------------------------------------------------------------
def _adaxbm_triplet_kernel(a_ref, p_ref, r_ref, mask_ref, loss_ref,
                           dap_ref, thr_ref, asq_ref, tot_ref, cnt_ref,
                           *, margin, tm_margin, eps, d_eps2):
    k = pl.program_id(0)
    nk = pl.num_programs(0)

    a = a_ref[...]                                        # (bs_pad, Dp), resident

    # ---- hoisted query-invariant stats + accumulator init (once) -----------
    @pl.when(k == 0)
    def _init():
        p0 = p_ref[...]                                   # (bs_pad, Dp)
        # Pre-biased stats: avoid one add + one sub per element per step.
        dap_ref[...] = jnp.sqrt(
            jnp.sum((a - p0 + eps) ** 2, axis=-1, keepdims=True)) + tm_margin
        thr_ref[...] = jnp.sum(a * p0, axis=-1, keepdims=True) - margin
        asq_ref[...] = jnp.sum((a + eps) ** 2, axis=-1, keepdims=True)
        tot_ref[...] = jnp.zeros_like(tot_ref)
        cnt_ref[...] = jnp.zeros_like(cnt_ref)

    r = r_ref[...]                                        # (tk, Dp)
    valid = mask_ref[...].astype(jnp.float32)             # (bs_pad, tk)

    # sim_mat tile: inputs_col . inputs_row^T   (MXU)
    sim = jax.lax.dot_general(
        a, r, dimension_numbers=(((1,), (1,)), ((), ())),
        precision=jax.lax.Precision.HIGHEST,
        preferred_element_type=jnp.float32)               # (bs_pad, tk)

    # Per-row stat sum_d (r - eps)^2 as a lane-dense (1, tk) vector, produced
    # directly on the MXU (avoids a cross-layout transpose of a lane-reduce).
    rsq = (r - eps) * (r - eps)
    ones = jnp.ones((8, a.shape[-1]), jnp.float32)
    c_full = jax.lax.dot_general(
        ones, rsq, dimension_numbers=(((1,), (1,)), ((), ())),
        precision=jax.lax.Precision.HIGHEST,
        preferred_element_type=jnp.float32)               # (8, tk), rows equal
    c_row = c_full[0:1, :]                                # (1, tk)

    # ||a_i - r_j + eps||^2  =  sum((a+eps)^2) + sum((r-eps)^2) - Dp*eps^2 - 2*sim
    d_an2 = asq_ref[...] + c_row - 2.0 * sim - d_eps2     # (bs_pad, tk)
    d_an = jnp.sqrt(jnp.maximum(d_an2, 0.0))              # clamp: cancellation

    # hard-negative mining: candidate negatives with sim > pos_sim - margin
    sel = jnp.where(sim > thr_ref[...], valid, 0.0)
    # per selected negative: max(d(a,p) - d(a,n) + sqrt(margin), 0)
    hinge = jnp.maximum(dap_ref[...] - d_an, 0.0)

    tot_ref[...] += jnp.sum(sel * hinge, axis=-1, keepdims=True)
    cnt_ref[...] += jnp.sum(sel, axis=-1, keepdims=True)

    # ---- finalize: mean over selected negatives (once) ---------------------
    @pl.when(k == nk - 1)
    def _finalize():
        total = jnp.sum(tot_ref[...])
        count = jnp.sum(cnt_ref[...])
        loss_ref[0, 0] = jnp.where(count > 0.0, total / count, 0.0)


# ----------------------------------------------------------------------------
# Host-side glue: vectorized (bs_pad, m_pad) int8 candidate-negative mask
# (pure integer label/index bookkeeping; no tensor math)
# ----------------------------------------------------------------------------
def _build_neg_mask(targets_col, targets_row, qidxs, nnegs, bs, n_neg,
                    same_batch_neg, bs_pad, m_pad):
    tc = np.asarray(targets_col)
    tr = np.asarray(targets_row)
    qidxs = np.asarray(qidxs)
    nnegs = np.asarray(nnegs)
    m = tr.shape[0]

    from_batch = (tc.shape == tr.shape) and np.array_equal(tc, tr)
    trc = tr.copy()
    if from_batch:
        trc[:bs] = -1

    mask = np.zeros((bs_pad, m_pad), dtype=np.int8)
    q = tc[:bs]                                           # query ids
    eq = qidxs[None, :] == q[:, None]                     # (bs, nq)
    has_q = eq.any(axis=1)                                # "qidx in qidxs"
    qloc = np.argmax(eq, axis=1)                          # first match

    if same_batch_neg:
        for i in range(bs):
            if has_q[i]:
                mask[i, 2 * bs + i * n_neg: 2 * bs + (i + 1) * n_neg] = 1
    else:
        nnegs2 = nnegs if nnegs.ndim > 1 else nnegs[:, None]
        this_nneg = nnegs2[qloc]                          # (bs, n_per)
        # valid[i, j] = trc[j] not in this_nneg[i]   (isin(..., invert=True))
        valid = ~(trc[None, :, None] == this_nneg[:, None, :]).any(axis=-1)
        if from_batch:
            valid[:, :bs] = False
        valid &= has_q[:, None]
        mask[:bs, :m] = valid.astype(np.int8)
    return mask


# ----------------------------------------------------------------------------
# Wrapper (mirrors AdaXbmTripletLoss.forward)
# ----------------------------------------------------------------------------
def adaxbm_triplet_loss(inputs_col, targets_col, inputs_row, targets_row,
                        qidxs, pidxs, nnegs, *, bs, n_neg,
                        margin=0.1, same_batch_neg=False, row_tile=512):
    del pidxs  # looked up but never used by the reference forward

    inputs_col = jnp.asarray(inputs_col, jnp.float32)
    inputs_row = jnp.asarray(inputs_row, jnp.float32)
    m, d = inputs_row.shape

    bs_pad = _round_up(bs, 32)                 # int8 mask + f32 sublane tiling
    d_pad = _round_up(d, 128)                  # lane axis / MXU contraction
    tk = min(_round_up(int(row_tile), 128), _round_up(m, 128))
    m_pad = _round_up(m, tk)

    anchors = jnp.zeros((bs_pad, d_pad), jnp.float32)
    anchors = anchors.at[:bs, :d].set(inputs_col[:bs])
    positives = jnp.zeros((bs_pad, d_pad), jnp.float32)
    positives = positives.at[:bs, :d].set(inputs_row[bs:2 * bs])
    rows = jnp.zeros((m_pad, d_pad), jnp.float32)
    rows = rows.at[:m, :d].set(inputs_row)

    neg_mask = jnp.asarray(_build_neg_mask(
        targets_col, targets_row, qidxs, nnegs, bs, n_neg,
        same_batch_neg, bs_pad, m_pad))

    kernel = functools.partial(
        _adaxbm_triplet_kernel,
        margin=float(margin),
        tm_margin=float(margin) ** 0.5,
        eps=_EPS,
        d_eps2=float(d_pad) * _EPS * _EPS)

    grid = (m_pad // tk,)
    loss = pl.pallas_call(
        kernel,
        out_shape=jax.ShapeDtypeStruct((1, 1), jnp.float32),
        grid=grid,
        in_specs=[
            pl.BlockSpec((bs_pad, d_pad), lambda k: (0, 0)),  # anchors (resident)
            pl.BlockSpec((bs_pad, d_pad), lambda k: (0, 0)),  # positives (resident)
            pl.BlockSpec((tk, d_pad), lambda k: (k, 0)),      # row tile (streamed)
            pl.BlockSpec((bs_pad, tk), lambda k: (0, k)),     # int8 mask tile
        ],
        out_specs=pl.BlockSpec((1, 1), lambda k: (0, 0),
                               memory_space=pltpu.MemorySpace.SMEM),
        scratch_shapes=[
            pltpu.VMEM((bs_pad, 1), jnp.float32),   # d(a, p) + sqrt(margin)
            pltpu.VMEM((bs_pad, 1), jnp.float32),   # a . p - margin (threshold)
            pltpu.VMEM((bs_pad, 1), jnp.float32),   # sum((a + eps)^2)
            pltpu.VMEM((bs_pad, 1), jnp.float32),   # running hinge sum per query
            pltpu.VMEM((bs_pad, 1), jnp.float32),   # running selected-neg count
        ],
        compiler_params=pltpu.CompilerParams(
            dimension_semantics=("arbitrary",)),
    )(anchors, positives, rows, neg_mask)
    return loss[0, 0]


# ----------------------------------------------------------------------------
# Pure-NumPy reference replicating the PyTorch loop semantics
# ----------------------------------------------------------------------------
def _reference_loss(inputs_col, targets_col, inputs_row, targets_row,
                    qidxs, nnegs, bs, n_neg, margin, same_batch_neg=False):
    X = np.asarray(inputs_col, np.float64)
    R = np.asarray(inputs_row, np.float64)
    tc = np.asarray(targets_col)
    tr = np.asarray(targets_row)
    qidxs = np.asarray(qidxs)
    nnegs = np.asarray(nnegs)
    sim = X @ R.T
    tm = margin ** 0.5
    from_batch = (tc.shape == tr.shape) and np.array_equal(tc, tr)
    trc = tr.copy()
    loss, cnt = 0.0, 0
    for i in range(bs):
        qidx = tc[i]
        match = np.nonzero(qidxs == qidx)[0]
        if match.size == 0:
            continue
        this_nneg = np.atleast_1d(nnegs[match[0]])
        if from_batch:
            trc[:bs] = -1
        pos_idx = bs + i
        pos_pair = sim[i, pos_idx]
        if same_batch_neg:
            neg_idx = np.arange(2 * bs + i * n_neg, 2 * bs + (i + 1) * n_neg)
        else:
            valid = ~np.isin(trc, this_nneg)
            if from_batch:
                valid[:bs] = False
            neg_idx = np.nonzero(valid)[0]
        neg_pair = sim[i, neg_idx]
        sel_idx = neg_idx[neg_pair > pos_pair - margin]
        for j in sel_idx:
            d_ap = np.linalg.norm(X[i] - R[pos_idx] + _EPS)
            d_an = np.linalg.norm(X[i] - R[j] + _EPS)
            loss += max(d_ap - d_an + tm, 0.0)
            cnt += 1
    return loss / cnt if cnt > 0 else 0.0


if __name__ == "__main__":
    # ---- test 1: small from-batch case (bs=2, nNeg=2, D=32) ----------------
    bs, n_neg, D = 2, 2, 32
    n = bs + bs + bs * n_neg  # 8 rows

    key = jax.random.PRNGKey(0)
    k1, k2 = jax.random.split(key)
    emb = jax.random.normal(k1, (n, D), dtype=jnp.float32)
    emb = emb / jnp.linalg.norm(emb, axis=-1, keepdims=True)

    targets = jnp.array([10, 11, 5, 6, 7, 8, 9, 3], dtype=jnp.int32)
    qidxs = np.array([10, 11, 12], dtype=np.int32)
    pidxs = np.array([[5], [6], [99]], dtype=np.int32)          # unused by forward
    nnegs = np.array([[5, 20, 21], [6, 22, 23], [99, 1, 2]], dtype=np.int32)

    loss = adaxbm_triplet_loss(emb, targets, emb, targets, qidxs, pidxs, nnegs,
                               bs=bs, n_neg=n_neg, margin=0.1,
                               same_batch_neg=False)
    loss = jax.block_until_ready(loss)
    ref = _reference_loss(np.asarray(emb), np.asarray(targets),
                          np.asarray(emb), np.asarray(targets),
                          qidxs, nnegs, bs, n_neg, margin=0.1)
    np.testing.assert_allclose(float(loss), ref, rtol=5e-3, atol=1e-3)

    # ---- test 2: same_batch_neg path ---------------------------------------
    loss_sb = adaxbm_triplet_loss(emb, targets, emb, targets, qidxs, pidxs,
                                  nnegs, bs=bs, n_neg=n_neg, margin=0.1,
                                  same_batch_neg=True)
    loss_sb = jax.block_until_ready(loss_sb)
    ref_sb = _reference_loss(np.asarray(emb), np.asarray(targets),
                             np.asarray(emb), np.asarray(targets),
                             qidxs, nnegs, bs, n_neg, margin=0.1,
                             same_batch_neg=True)
    np.testing.assert_allclose(float(loss_sb), ref_sb, rtol=5e-3, atol=1e-3)

    # ---- test 3: multi-tile grid over m (bs=16, nNeg=20, D=96, tk=128) -----
    bs2, n_neg2, D2 = 16, 20, 96
    n2 = bs2 + bs2 + bs2 * n_neg2  # 352 rows -> 3 grid steps at tk=128
    emb2 = jax.random.normal(k2, (n2, D2), dtype=jnp.float32)
    emb2 = emb2 / jnp.linalg.norm(emb2, axis=-1, keepdims=True)

    rng = np.random.default_rng(0)
    targets2 = np.concatenate([
        np.arange(100, 100 + bs2),                      # query ids
        np.arange(200, 200 + bs2),                      # positive ids
        rng.integers(300, 340, size=bs2 * n_neg2),      # negative ids
    ]).astype(np.int32)
    qidxs2 = np.arange(100, 100 + bs2 - 2).astype(np.int32)   # last 2 skipped
    pidxs2 = np.arange(200, 200 + qidxs2.shape[0]).astype(np.int32)
    nnegs2 = rng.integers(300, 340, size=(qidxs2.shape[0], 5)).astype(np.int32)

    loss2 = adaxbm_triplet_loss(emb2, targets2, emb2, targets2,
                                qidxs2, pidxs2, nnegs2,
                                bs=bs2, n_neg=n_neg2, margin=0.1,
                                same_batch_neg=False, row_tile=128)
    loss2 = jax.block_until_ready(loss2)
    ref2 = _reference_loss(np.asarray(emb2), targets2, np.asarray(emb2),
                           targets2, qidxs2, nnegs2, bs2, n_neg2, margin=0.1)
    np.testing.assert_allclose(float(loss2), ref2, rtol=5e-3, atol=1e-3)

    print("KERNEL_OK")
</pallas_src>

<mosaic_0001>
module attributes {stable_mosaic.version = 11 : i64} {
  func.func @_adaxbm_triplet_kernel(%arg0: i32, %arg1: memref<32x128xf32, #tpu.memory_space<vmem>>, %arg2: memref<32x128xf32, #tpu.memory_space<vmem>>, %arg3: memref<128x128xf32, #tpu.memory_space<vmem>>, %arg4: memref<32x128xi8, #tpu.memory_space<vmem>>, %arg5: memref<1x1xf32, #tpu.memory_space<smem>>, %arg6: memref<32x1xf32, #tpu.memory_space<vmem>>, %arg7: memref<32x1xf32, #tpu.memory_space<vmem>>, %arg8: memref<32x1xf32, #tpu.memory_space<vmem>>, %arg9: memref<32x1xf32, #tpu.memory_space<vmem>>, %arg10: memref<32x1xf32, #tpu.memory_space<vmem>>) attributes {dimension_semantics = [#tpu.dimension_semantics<arbitrary>], iteration_bounds = array<i64: 1>, scalar_prefetch = 0 : i64, scratch_operands = 5 : i64, tpu.core_type = #tpu.core_type<tc>, window_params = [{pipeline_mode = #tpu.pipeline_mode<synchronous>, transform_indices = @transform_0, window_bounds = array<i64: 32, 128>}, {pipeline_mode = #tpu.pipeline_mode<synchronous>, transform_indices = @transform_1, window_bounds = array<i64: 32, 128>}, {transform_indices = @transform_2, window_bounds = array<i64: 128, 128>}, {transform_indices = @transform_3, window_bounds = array<i64: 32, 128>}, {transform_indices = @transform_4, window_bounds = array<i64: 1, 1>}]} {
    %c0 = arith.constant 0 : index
    %c0_0 = arith.constant 0 : index
    %0 = vector.load %arg1[%c0, %c0_0] : memref<32x128xf32, #tpu.memory_space<vmem>>, vector<32x128xf32>
    %c0_i32 = arith.constant 0 : i32
    %1 = arith.cmpi eq, %arg0, %c0_i32 : i32
    %2 = arith.extui %1 : i1 to i32
    %c0_i32_1 = arith.constant 0 : i32
    %3 = arith.cmpi ne, %2, %c0_i32_1 : i32
    scf.if %3 {
      %c0_33 = arith.constant 0 : index
      %c0_34 = arith.constant 0 : index
      %52 = vector.load %arg2[%c0_33, %c0_34] : memref<32x128xf32, #tpu.memory_space<vmem>>, vector<32x128xf32>
      %53 = arith.subf %0, %52 : vector<32x128xf32>
      %cst_35 = arith.constant 9.99999997E-7 : f32
      %54 = vector.broadcast %cst_35 : f32 to vector<32x128xf32>
      %55 = arith.addf %53, %54 : vector<32x128xf32>
      %56 = arith.mulf %55, %55 : vector<32x128xf32>
      %cst_36 = arith.constant dense<0.000000e+00> : vector<32xf32>
      %57 = vector.multi_reduction <add>, %56, %cst_36 [1] : vector<32x128xf32> to vector<32xf32>
      %58 = vector.shape_cast %57 : vector<32xf32> to vector<32x1xf32>
      %59 = math.sqrt %58 : vector<32x1xf32>
      %cst_37 = arith.constant 0.316227764 : f32
      %60 = vector.broadcast %cst_37 : f32 to vector<32x1xf32>
      %61 = arith.addf %59, %60 : vector<32x1xf32>
      %c0_38 = arith.constant 0 : index
      %c0_39 = arith.constant 0 : index
      %62 = vector.load %arg6[%c0_38, %c0_39] : memref<32x1xf32, #tpu.memory_space<vmem>>, vector<32x1xf32>
      tpu.vector_store %arg6[%c0_38, %c0_39], %61 {strides = array<i32>} : memref<32x1xf32, #tpu.memory_space<vmem>>, vector<32x1xf32>,
      %63 = arith.mulf %0, %52 : vector<32x128xf32>
      %cst_40 = arith.constant dense<0.000000e+00> : vector<32xf32>
      %64 = vector.multi_reduction <add>, %63, %cst_40 [1] : vector<32x128xf32> to vector<32xf32>
      %65 = vector.shape_cast %64 : vector<32xf32> to vector<32x1xf32>
      %cst_41 = arith.constant 1.000000e-01 : f32
      %66 = vector.broadcast %cst_41 : f32 to vector<32x1xf32>
      %67 = arith.subf %65, %66 : vector<32x1xf32>
      %c0_42 = arith.constant 0 : index
      %c0_43 = arith.constant 0 : index
      %68 = vector.load %arg7[%c0_42, %c0_43] : memref<32x1xf32, #tpu.memory_space<vmem>>, vector<32x1xf32>
      tpu.vector_store %arg7[%c0_42, %c0_43], %67 {strides = array<i32>} : memref<32x1xf32, #tpu.memory_space<vmem>>, vector<32x1xf32>,
      %cst_44 = arith.constant 9.99999997E-7 : f32
      %69 = vector.broadcast %cst_44 : f32 to vector<32x128xf32>
      %70 = arith.addf %0, %69 : vector<32x128xf32>
      %71 = arith.mulf %70, %70 : vector<32x128xf32>
      %cst_45 = arith.constant dense<0.000000e+00> : vector<32xf32>
      %72 = vector.multi_reduction <add>, %71, %cst_45 [1] : vector<32x128xf32> to vector<32xf32>
      %73 = vector.shape_cast %72 : vector<32xf32> to vector<32x1xf32>
      %c0_46 = arith.constant 0 : index
      %c0_47 = arith.constant 0 : index
      %74 = vector.load %arg8[%c0_46, %c0_47] : memref<32x1xf32, #tpu.memory_space<vmem>>, vector<32x1xf32>
      tpu.vector_store %arg8[%c0_46, %c0_47], %73 {strides = array<i32>} : memref<32x1xf32, #tpu.memory_space<vmem>>, vector<32x1xf32>,
      %cst_48 = arith.constant 0.000000e+00 : f32
      %75 = vector.broadcast %cst_48 : f32 to vector<32x1xf32>
      %c0_49 = arith.constant 0 : index
      %c0_50 = arith.constant 0 : index
      %76 = vector.load %arg9[%c0_49, %c0_50] : memref<32x1xf32, #tpu.memory_space<vmem>>, vector<32x1xf32>
      tpu.vector_store %arg9[%c0_49, %c0_50], %75 {strides = array<i32>} : memref<32x1xf32, #tpu.memory_space<vmem>>, vector<32x1xf32>,
      %cst_51 = arith.constant 0.000000e+00 : f32
      %77 = vector.broadcast %cst_51 : f32 to vector<32x1xf32>
      %c0_52 = arith.constant 0 : index
      %c0_53 = arith.constant 0 : index
      %78 = vector.load %arg10[%c0_52, %c0_53] : memref<32x1xf32, #tpu.memory_space<vmem>>, vector<32x1xf32>
      tpu.vector_store %arg10[%c0_52, %c0_53], %77 {strides = array<i32>} : memref<32x1xf32, #tpu.memory_space<vmem>>, vector<32x1xf32>,
    } else {
    }
    %c0_2 = arith.constant 0 : index
    %c0_3 = arith.constant 0 : index
    %4 = vector.load %arg3[%c0_2, %c0_3] : memref<128x128xf32, #tpu.memory_space<vmem>>, vector<128x128xf32>
    %c0_4 = arith.constant 0 : index
    %c0_5 = arith.constant 0 : index
    %5 = vector.load %arg4[%c0_4, %c0_5] : memref<32x128xi8, #tpu.memory_space<vmem>>, vector<32x128xi8>
    %6 = arith.sitofp %5 : vector<32x128xi8> to vector<32x128xf32>
    %cst = arith.constant dense<0.000000e+00> : vector<32x128xf32>
    %7 = tpu.matmul %0, %4, %cst {dimension_numbers = #tpu.dot_dimension_numbers<[1], [1], [0], [0], [0, 0, 1, 0], [], []>, precision = #tpu.contract_precision<fp32>} : vector<32x128xf32>, vector<128x128xf32>, vector<32x128xf32> -> vector<32x128xf32>
    %cst_6 = arith.constant 9.99999997E-7 : f32
    %8 = vector.broadcast %cst_6 : f32 to vector<128x128xf32>
    %9 = arith.subf %4, %8 : vector<128x128xf32>
    %cst_7 = arith.constant 9.99999997E-7 : f32
    %10 = vector.broadcast %cst_7 : f32 to vector<128x128xf32>
    %11 = arith.subf %4, %10 : vector<128x128xf32>
    %12 = arith.mulf %9, %11 : vector<128x128xf32>
    %cst_8 = arith.constant 1.000000e+00 : f32
    %13 = vector.broadcast %cst_8 : f32 to vector<8x128xf32>
    %cst_9 = arith.constant dense<0.000000e+00> : vector<8x128xf32>
    %14 = tpu.matmul %13, %12, %cst_9 {dimension_numbers = #tpu.dot_dimension_numbers<[1], [1], [0], [0], [0, 0, 1, 0], [], []>, precision = #tpu.contract_precision<fp32>} : vector<8x128xf32>, vector<128x128xf32>, vector<8x128xf32> -> vector<8x128xf32>
    %15 = vector.extract_strided_slice %14 {offsets = [0, 0], sizes = [1, 128], strides = [1, 1]} : vector<8x128xf32> to vector<1x128xf32>
    %c0_10 = arith.constant 0 : index
    %c0_11 = arith.constant 0 : index
    %16 = vector.load %arg8[%c0_10, %c0_11] : memref<32x1xf32, #tpu.memory_space<vmem>>, vector<32x1xf32>
    %17 = vector.broadcast %16 : vector<32x1xf32> to vector<32x128xf32>
    %18 = vector.broadcast %15 : vector<1x128xf32> to vector<32x128xf32>
    %19 = arith.addf %17, %18 : vector<32x128xf32>
    %cst_12 = arith.constant 2.000000e+00 : f32
    %20 = vector.broadcast %cst_12 : f32 to vector<32x128xf32>
    %21 = arith.mulf %20, %7 : vector<32x128xf32>
    %22 = arith.subf %19, %21 : vector<32x128xf32>
    %cst_13 = arith.constant 1.280000e-10 : f32
    %23 = vector.broadcast %cst_13 : f32 to vector<32x128xf32>
    %24 = arith.subf %22, %23 : vector<32x128xf32>
    %cst_14 = arith.constant 0.000000e+00 : f32
    %25 = vector.broadcast %cst_14 : f32 to vector<32x128xf32>
    %26 = arith.maximumf %24, %25 : vector<32x128xf32>
    %27 = math.sqrt %26 : vector<32x128xf32>
    %c0_15 = arith.constant 0 : index
    %c0_16 = arith.constant 0 : index
    %28 = vector.load %arg7[%c0_15, %c0_16] : memref<32x1xf32, #tpu.memory_space<vmem>>, vector<32x1xf32>
    %29 = vector.broadcast %28 : vector<32x1xf32> to vector<32x128xf32>
    %30 = arith.cmpf ogt, %7, %29 : vector<32x128xf32>
    %cst_17 = arith.constant 0.000000e+00 : f32
    %31 = vector.broadcast %cst_17 : f32 to vector<32x128xf32>
    %32 = arith.select %30, %6, %31 : vector<32x128xi1>, vector<32x128xf32>
    %c0_18 = arith.constant 0 : index
    %c0_19 = arith.constant 0 : index
    %33 = vector.load %arg6[%c0_18, %c0_19] : memref<32x1xf32, #tpu.memory_space<vmem>>, vector<32x1xf32>
    %34 = vector.broadcast %33 : vector<32x1xf32> to vector<32x128xf32>
    %35 = arith.subf %34, %27 : vector<32x128xf32>
    %cst_20 = arith.constant 0.000000e+00 : f32
    %36 = vector.broadcast %cst_20 : f32 to vector<32x128xf32>
    %37 = arith.maximumf %35, %36 : vector<32x128xf32>
    %c0_21 = arith.constant 0 : index
    %c0_22 = arith.constant 0 : index
    %38 = vector.load %arg9[%c0_21, %c0_22] : memref<32x1xf32, #tpu.memory_space<vmem>>, vector<32x1xf32>
    %39 = arith.mulf %32, %37 : vector<32x128xf32>
    %cst_23 = arith.constant dense<0.000000e+00> : vector<32xf32>
    %40 = vector.multi_reduction <add>, %39, %cst_23 [1] : vector<32x128xf32> to vector<32xf32>
    %41 = vector.shape_cast %40 : vector<32xf32> to vector<32x1xf32>
    %42 = arith.addf %38, %41 : vector<32x1xf32>
    %c0_24 = arith.constant 0 : index
    %c0_25 = arith.constant 0 : index
    %43 = vector.load %arg9[%c0_24, %c0_25] : memref<32x1xf32, #tpu.memory_space<vmem>>, vector<32x1xf32>
    tpu.vector_store %arg9[%c0_24, %c0_25], %42 {strides = array<i32>} : memref<32x1xf32, #tpu.memory_space<vmem>>, vector<32x1xf32>,
    %c0_26 = arith.constant 0 : index
    %c0_27 = arith.constant 0 : index
    %44 = vector.load %arg10[%c0_26, %c0_27] : memref<32x1xf32, #tpu.memory_space<vmem>>, vector<32x1xf32>
    %cst_28 = arith.constant dense<0.000000e+00> : vector<32xf32>
    %45 = vector.multi_reduction <add>, %32, %cst_28 [1] : vector<32x128xf32> to vector<32xf32>
    %46 = vector.shape_cast %45 : vector<32xf32> to vector<32x1xf32>
    %47 = arith.addf %44, %46 : vector<32x1xf32>
    %c0_29 = arith.constant 0 : index
    %c0_30 = arith.constant 0 : index
    %48 = vector.load %arg10[%c0_29, %c0_30] : memref<32x1xf32, #tpu.memory_space<vmem>>, vector<32x1xf32>
    tpu.vector_store %arg10[%c0_29, %c0_30], %47 {strides = array<i32>} : memref<32x1xf32, #tpu.memory_space<vmem>>, vector<32x1xf32>,
    %c0_i32_31 = arith.constant 0 : i32
    %49 = arith.cmpi eq, %arg0, %c0_i32_31 : i32
    %50 = arith.extui %49 : i1 to i32
    %c0_i32_32 = arith.constant 0 : i32
    %51 = arith.cmpi ne, %50, %c0_i32_32 : i32
    scf.if %51 {
      %c0_33 = arith.constant 0 : index
      %c0_34 = arith.constant 0 : index
      %52 = vector.load %arg9[%c0_33, %c0_34] : memref<32x1xf32, #tpu.memory_space<vmem>>, vector<32x1xf32>
      %53 = vector.shape_cast %52 : vector<32x1xf32> to vector<1x32x1xf32>
      %cst_35 = arith.constant dense<0.000000e+00> : vector<1xf32>
      %54 = vector.multi_reduction <add>, %53, %cst_35 [1, 2] : vector<1x32x1xf32> to vector<1xf32>
      %55 = vector.shape_cast %54 : vector<1xf32> to vector<1x1x1xf32>
      %56 = vector.extract %55[0, 0, 0] : f32 from vector<1x1x1xf32>
      %c0_36 = arith.constant 0 : index
      %c0_37 = arith.constant 0 : index
      %57 = vector.load %arg10[%c0_36, %c0_37] : memref<32x1xf32, #tpu.memory_space<vmem>>, vector<32x1xf32>
      %58 = vector.shape_cast %57 : vector<32x1xf32> to vector<1x32x1xf32>
      %cst_38 = arith.constant dense<0.000000e+00> : vector<1xf32>
      %59 = vector.multi_reduction <add>, %58, %cst_38 [1, 2] : vector<1x32x1xf32> to vector<1xf32>
      %60 = vector.shape_cast %59 : vector<1xf32> to vector<1x1x1xf32>
      %61 = vector.extract %60[0, 0, 0] : f32 from vector<1x1x1xf32>
      %cst_39 = arith.constant 0.000000e+00 : f32
      %62 = arith.cmpf ogt, %61, %cst_39 : f32
      %63 = arith.divf %56, %61 : f32
      %cst_40 = arith.constant 0.000000e+00 : f32
      %64 = arith.select %62, %63, %cst_40 : f32
      %c0_41 = arith.constant 0 : index
      %c0_42 = arith.constant 0 : index
      %65 = memref.load %arg5[%c0_41, %c0_42] : memref<1x1xf32, #tpu.memory_space<smem>>
      memref.store %64, %arg5[%c0_41, %c0_42] : memref<1x1xf32, #tpu.memory_space<smem>>
    } else {
    }
    return
  }
  func.func @transform_0(%arg0: i32) -> (i32, i32) {
    %c0_i32 = arith.constant 0 : i32
    %c0_i32_0 = arith.constant 0 : i32
    %c0_i32_1 = arith.constant 0 : i32
    return %c0_i32, %c0_i32_0 : i32, i32
  }
  func.func @transform_1(%arg0: i32) -> (i32, i32) {
    %c0_i32 = arith.constant 0 : i32
    %c0_i32_0 = arith.constant 0 : i32
    %c0_i32_1 = arith.constant 0 : i32
    return %c0_i32, %c0_i32_0 : i32, i32
  }
  func.func @transform_2(%arg0: i32) -> (i32, i32) {
    %c0_i32 = arith.constant 0 : i32
    %c0_i32_0 = arith.constant 0 : i32
    return %arg0, %c0_i32 : i32, i32
  }
  func.func @transform_3(%arg0: i32) -> (i32, i32) {
    %c0_i32 = arith.constant 0 : i32
    %c0_i32_0 = arith.constant 0 : i32
    return %c0_i32, %arg0 : i32, i32
  }
  func.func @transform_4(%arg0: i32) -> (i32, i32) {
    %c0_i32 = arith.constant 0 : i32
    %c0_i32_0 = arith.constant 0 : i32
    %c0_i32_1 = arith.constant 0 : i32
    return %c0_i32, %c0_i32_0 : i32, i32
  }
}

</mosaic_0001>

<llo_original>
// kernel: tpu_custom_call.1
$region0: #{tpu_custom_call.1}
  #allocation0 [shape = 'u32[]', space=smem, size = 0x4, offset = 0x4, fixed_abs, tag = 'smem constant byte address 0x4 - core index']
  #allocation1 [shape = 'u32[72,128]{1,0:T(1,128)}', space=vmem, size = 0x9000, scoped, tag = 'internal scratch']
  #allocation2 [shape = 'f32[32,1]{1,0:T(8,128)}', space=vmem, size = 0x4000, scoped, tag = 'scratch operand']
  #allocation3 [shape = 'f32[32,1]{1,0:T(8,128)}', space=vmem, size = 0x4000, scoped, tag = 'scratch operand']
  #allocation4 [shape = 'f32[32,1]{1,0:T(8,128)}', space=vmem, size = 0x4000, scoped, tag = 'scratch operand']
  #allocation5 [shape = 'f32[32,1]{1,0:T(8,128)}', space=vmem, size = 0x4000, scoped, tag = 'scratch operand']
  #allocation6 [shape = 'f32[32,1]{1,0:T(8,128)}', space=vmem, size = 0x4000, scoped, tag = 'scratch operand']
  %s0 = inlined_call_operand.hbm [shape: f32[32,128], index: 0, kind: input, shape index: {}]
  %s1 = inlined_call_operand.hbm [shape: f32[32,128], index: 1, kind: input, shape index: {}]
  %s2 = inlined_call_operand.hbm [shape: f32[128,128], index: 2, kind: input, shape index: {}]
  %s3 = inlined_call_operand.hbm [shape: s8[32,128], index: 3, kind: input, shape index: {}]
  %s4 = inlined_call_operand.hbm [shape: f32[1,1], index: 4, kind: output, shape index: {}]
  %s5 = sld [smem:[#allocation0]]
  $region50: #{tpu_custom_call.1} parent=0
    _
  %s7 = ssub.s32 1, %s5
  %s8 = scalar_select 0, %s7, %s5
  $region1: #{tpu_custom_call.1} parent=0
    #allocation7 [shape = 'u8[16384]{0}', space=vmem, size = 0x4000, scoped, tag = 'input window, operand 0, single buffered']
    #allocation8 [shape = 's32[1]{0}', space=sflag, size = 0x4, scoped, tag = 'scoped memory for tpu_custom_call.1']
    #allocation9 [shape = 's32[1]{0}', space=sflag, size = 0x4, scoped, tag = 'scoped memory for tpu_custom_call.1']
    #allocation10 [shape = 'u8[16384]{0}', space=vmem, size = 0x4000, scoped, tag = 'input window, operand 1, single buffered']
    #allocation11 [shape = 's32[1]{0}', space=sflag, size = 0x4, scoped, tag = 'scoped memory for tpu_custom_call.1']
    #allocation12 [shape = 'u8[65536]{0}', space=vmem, size = 0x10000, scoped, tag = 'input window, operand 2, single buffered']
    #allocation13 [shape = 'u8[4096]{0}', space=vmem, size = 0x1000, scoped, tag = 'input window, operand 3, single buffered']
    #allocation14 [shape = 's32[1]{0}', space=sflag, size = 0x4, scoped, tag = 'scoped memory for tpu_custom_call.1']
    #allocation15 [shape = 'u8[512]{0}', space=smem, size = 0x200, scoped, tag = 'output window, operand 0, single buffered']
    %9 = vsyncpa [#allocation8], 0
    %10 = vsyncpa [#allocation11], 0
    %11 = vsyncpa [#allocation14], 0
    %12 = vsyncpa [#allocation9], 0
    // Predicated region
    $region2: #{tpu_custom_call.1} parent=1 // pred_check
      _
    $region3: #{tpu_custom_call.1} parent=1 // pred_check_branch
      %14 = sbr.rel (0) target = $region5
    $region4: #{tpu_custom_call.1} parent=1 // pred_region
      %16 = vsyncadd [#allocation8], 0
      %s17 = sshll.u32 %s0, 4
      %s18 = int_to_ptr.hbm [resolvable:$true] %s17
      %s19 = sshll.u32 [#allocation7], 4
      %s20 = int_to_ptr.vmem [resolvable:$true] %s19
      %25 = dma.hbm_to_vmem [thread:$0]  %s18, 512, %s20, [#allocation8], 128, 128, 8
    $region5: #{tpu_custom_call.1} parent=1 // pred_fallthru
      _
    // Predicated region
    $region6: #{tpu_custom_call.1} parent=1 // pred_check
      _
    $region7: #{tpu_custom_call.1} parent=1 // pred_check_branch
      %27 = sbr.rel (0) target = $region9
    $region8: #{tpu_custom_call.1} parent=1 // pred_region
      %29 = vsyncadd [#allocation11], 0
      %s30 = sshll.u32 %s1, 4
      %s31 = int_to_ptr.hbm [resolvable:$true] %s30
      %s32 = sshll.u32 [#allocation10], 4
      %s33 = int_to_ptr.vmem [resolvable:$true] %s32
      %38 = dma.hbm_to_vmem [thread:$0]  %s31, 512, %s33, [#allocation11], 128, 128, 8
    $region9: #{tpu_custom_call.1} parent=1 // pred_fallthru
      _
    // Predicated region
    $region10: #{tpu_custom_call.1} parent=1 // pred_check
      _
    $region11: #{tpu_custom_call.1} parent=1 // pred_check_branch
      %40 = sbr.rel (0) target = $region13
    $region12: #{tpu_custom_call.1} parent=1 // pred_region
      %42 = vsyncadd [#allocation11], 0
      %s43 = sshll.u32 %s2, 4
      %s44 = int_to_ptr.hbm [resolvable:$true] %s43
      %s45 = sshll.u32 [#allocation12], 4
      %s46 = int_to_ptr.vmem [resolvable:$true] %s45
      %51 = dma.hbm_to_vmem [thread:$0]  %s44, 2048, %s46, [#allocation11], 128, 128, 8
    $region13: #{tpu_custom_call.1} parent=1 // pred_fallthru
      _
    // Predicated region
    $region14: #{tpu_custom_call.1} parent=1 // pred_check
      _
    $region15: #{tpu_custom_call.1} parent=1 // pred_check_branch
      %53 = sbr.rel (0) target = $region17
    $region16: #{tpu_custom_call.1} parent=1 // pred_region
      %55 = vsyncadd [#allocation14], 0
      %s57 = sshll.u32 %s3, 4
      %s58 = int_to_ptr.hbm [resolvable:$true] %s57
      %s59 = sshll.u32 [#allocation13], 4
      %s60 = int_to_ptr.vmem [resolvable:$true] %s59
      %62 = dma.hbm_to_vmem [thread:$0]  %s58, 128, %s60, [#allocation14]
    $region17: #{tpu_custom_call.1} parent=1 // pred_fallthru
      _
    // Predicated region
    $region18: #{tpu_custom_call.1} parent=1 // pred_check
      _
    $region19: #{tpu_custom_call.1} parent=1 // pred_check_branch
      %64 = sbr.rel (0) target = $region21
    $region20: #{tpu_custom_call.1} parent=1 // pred_region
      %66 = dma.done [#allocation8], 512
    $region21: #{tpu_custom_call.1} parent=1 // pred_fallthru
      _
    // Predicated region
    $region22: #{tpu_custom_call.1} parent=1 // pred_check
      _
    $region23: #{tpu_custom_call.1} parent=1 // pred_check_branch
      %68 = sbr.rel (0) target = $region25
    $region24: #{tpu_custom_call.1} parent=1 // pred_region
      %70 = dma.done [#allocation11], 512
    $region25: #{tpu_custom_call.1} parent=1 // pred_fallthru
      _
    // Predicated region
    $region26: #{tpu_custom_call.1} parent=1 // pred_check
      _
    $region27: #{tpu_custom_call.1} parent=1 // pred_check_branch
      %72 = sbr.rel (0) target = $region29
    $region28: #{tpu_custom_call.1} parent=1 // pred_region
      %74 = dma.done [#allocation11], 2048
    $region29: #{tpu_custom_call.1} parent=1 // pred_fallthru
      _
    // Predicated region
    $region30: #{tpu_custom_call.1} parent=1 // pred_check
      _
    $region31: #{tpu_custom_call.1} parent=1 // pred_check_branch
      %76 = sbr.rel (0) target = $region33
    $region32: #{tpu_custom_call.1} parent=1 // pred_region
      %78 = dma.done [#allocation14], 128
    $region33: #{tpu_custom_call.1} parent=1 // pred_fallthru
      _
    %v79 = vld [vmem:[#allocation7] sm:$0xff]
    %v80 = vld [vmem:[#allocation7 + $0x8] sm:$0xff]
    %v81 = vld [vmem:[#allocation7 + $0x10] sm:$0xff]
    %v82 = vld [vmem:[#allocation7 + $0x18] sm:$0xff]
    %p83 = scmp.eq.s32.totalorder 0, 0
    // Predicated region
    $region34: #{tpu_custom_call.1} parent=1 // pred_check
      %p84 = pneg %p83
    $region35: #{tpu_custom_call.1} parent=1 // pred_check_branch
      %86 = sbr.rel (%p84) target = $region37
    $region36: #{tpu_custom_call.1} parent=1 // pred_region
      %v87 = vld [vmem:[#allocation10] sm:$0xff]
      %v88 = vld [vmem:[#allocation10 + $0x8] sm:$0xff]
      %v89 = vld [vmem:[#allocation10 + $0x10] sm:$0xff]
      %v90 = vld [vmem:[#allocation10 + $0x18] sm:$0xff]
      %v91 = vsub.f32 %v79, %v87
      %v92 = vsub.f32 %v80, %v88
      %v93 = vsub.f32 %v81, %v89
      %v94 = vsub.f32 %v82, %v90
      %v95 = vadd.f32 %v91, 1e-06
      %v96 = vadd.f32 %v92, 1e-06
      %v97 = vadd.f32 %v93, 1e-06
      %v98 = vadd.f32 %v94, 1e-06
      %v99 = vmul.f32 %v95, %v95
      %v100 = vmul.f32 %v96, %v96
      %v101 = vmul.f32 %v97, %v97
      %v102 = vmul.f32 %v98, %v98
      %103 = vadd.xlane.f32.xlu0 %v99
      %v104 = vpop.xlane.xlu0 %103
      %105 = vadd.xlane.f32.xlu0 %v100
      %v106 = vpop.xlane.xlu0 %105
      %107 = vadd.xlane.f32.xlu0 %v101
      %v108 = vpop.xlane.xlu0 %107
      %109 = vadd.xlane.f32.xlu0 %v102
      %v110 = vpop.xlane.xlu0 %109
      %v111 = vrsqrt.pop %v104
      %v112 = vmul.f32 %v111, %v104
      %v113 = vmul.f32 %v112, %v111
      %v114 = vmul.f32 0.5, %v113
      %v115 = vsub.f32 1.5, %v114
      %v116 = vmul.f32 %v111, %v115
      %v117 = vmul.f32 %v104, %v116
      %vm118 = vcmp.eq.f32.partialorder %v104, inf
      %v119 = vsel %vm118, %v104, %v117
      %vm120 = vcmp.eq.f32.partialorder %v104, 0.0
      %v121 = vand.u32 %v104, 2147483648
      %v122 = vsel %vm120, %v121, %v119
      %v123 = vrsqrt.pop %v106
      %v124 = vmul.f32 %v123, %v106
      %v125 = vmul.f32 %v124, %v123
      %v126 = vmul.f32 0.5, %v125
      %v127 = vsub.f32 1.5, %v126
      %v128 = vmul.f32 %v123, %v127
      %v129 = vmul.f32 %v106, %v128
      %vm130 = vcmp.eq.f32.partialorder %v106, inf
      %v131 = vsel %vm130, %v106, %v129
      %vm132 = vcmp.eq.f32.partialorder %v106, 0.0
      %v133 = vand.u32 %v106, 2147483648
      %v134 = vsel %vm132, %v133, %v131
      %v135 = vrsqrt.pop %v108
      %v136 = vmul.f32 %v135, %v108
      %v137 = vmul.f32 %v136, %v135
      %v138 = vmul.f32 0.5, %v137
      %v139 = vsub.f32 1.5, %v138
      %v140 = vmul.f32 %v135, %v139
      %v141 = vmul.f32 %v108, %v140
      %vm142 = vcmp.eq.f32.partialorder %v108, inf
      %v143 = vsel %vm142, %v108, %v141
      %vm144 = vcmp.eq.f32.partialorder %v108, 0.0
      %v145 = vand.u32 %v108, 2147483648
      %v146 = vsel %vm144, %v145, %v143
      %v147 = vrsqrt.pop %v110
      %v148 = vmul.f32 %v147, %v110
      %v149 = vmul.f32 %v148, %v147
      %v150 = vmul.f32 0.5, %v149
      %v151 = vsub.f32 1.5, %v150
      %v152 = vmul.f32 %v147, %v151
      %v153 = vmul.f32 %v110, %v152
      %vm154 = vcmp.eq.f32.partialorder %v110, inf
      %v155 = vsel %vm154, %v110, %v153
      %vm156 = vcmp.eq.f32.partialorder %v110, 0.0
      %v157 = vand.u32 %v110, 2147483648
      %v158 = vsel %vm156, %v157, %v155
      %v159 = vadd.f32 %v122, 0.31622776
      %v160 = vadd.f32 %v134, 0.31622776
      %v161 = vadd.f32 %v146, 0.31622776
      %v162 = vadd.f32 %v158, 0.31622776
      %vm163 = vcmask 7168
      %164 = vst.msk [vmem:[#allocation2] sm:$0xff] %vm163, %v159
      %165 = vst.msk [vmem:[#allocation2 + $0x8] sm:$0xff] %vm163, %v160
      %166 = vst.msk [vmem:[#allocation2 + $0x10] sm:$0xff] %vm163, %v161
      %167 = vst.msk [vmem:[#allocation2 + $0x18] sm:$0xff] %vm163, %v162
      %v168 = vmul.f32 %v79, %v87
      %v169 = vmul.f32 %v80, %v88
      %v170 = vmul.f32 %v81, %v89
      %v171 = vmul.f32 %v82, %v90
      %172 = vadd.xlane.f32.xlu0 %v168
      %v173 = vpop.xlane.xlu0 %172
      %174 = vadd.xlane.f32.xlu0 %v169
      %v175 = vpop.xlane.xlu0 %174
      %176 = vadd.xlane.f32.xlu0 %v170
      %v177 = vpop.xlane.xlu0 %176
      %178 = vadd.xlane.f32.xlu0 %v171
      %v179 = vpop.xlane.xlu0 %178
      %v180 = vsub.f32 %v173, 0.1
      %v181 = vsub.f32 %v175, 0.1
      %v182 = vsub.f32 %v177, 0.1
      %v183 = vsub.f32 %v179, 0.1
      %184 = vst.msk [vmem:[#allocation3] sm:$0xff] %vm163, %v180
      %185 = vst.msk [vmem:[#allocation3 + $0x8] sm:$0xff] %vm163, %v181
      %186 = vst.msk [vmem:[#allocation3 + $0x10] sm:$0xff] %vm163, %v182
      %187 = vst.msk [vmem:[#allocation3 + $0x18] sm:$0xff] %vm163, %v183
      %v188 = vadd.f32 %v79, 1e-06
      %v189 = vadd.f32 %v80, 1e-06
      %v190 = vadd.f32 %v81, 1e-06
      %v191 = vadd.f32 %v82, 1e-06
      %v192 = vmul.f32 %v188, %v188
      %v193 = vmul.f32 %v189, %v189
      %v194 = vmul.f32 %v190, %v190
      %v195 = vmul.f32 %v191, %v191
      %196 = vadd.xlane.f32.xlu0 %v192
      %v197 = vpop.xlane.xlu0 %196
      %198 = vadd.xlane.f32.xlu0 %v193
      %v199 = vpop.xlane.xlu0 %198
      %200 = vadd.xlane.f32.xlu0 %v194
      %v201 = vpop.xlane.xlu0 %200
      %202 = vadd.xlane.f32.xlu0 %v195
      %v203 = vpop.xlane.xlu0 %202
      %204 = vst.msk [vmem:[#allocation4] sm:$0xff] %vm163, %v197
      %205 = vst.msk [vmem:[#allocation4 + $0x8] sm:$0xff] %vm163, %v199
      %206 = vst.msk [vmem:[#allocation4 + $0x10] sm:$0xff] %vm163, %v201
      %207 = vst.msk [vmem:[#allocation4 + $0x18] sm:$0xff] %vm163, %v203
      %208 = vst.msk [vmem:[#allocation5] sm:$0xff] %vm163, 0.0
      %209 = vst.msk [vmem:[#allocation5 + $0x8] sm:$0xff] %vm163, 0.0
      %210 = vst.msk [vmem:[#allocation5 + $0x10] sm:$0xff] %vm163, 0.0
      %211 = vst.msk [vmem:[#allocation5 + $0x18] sm:$0xff] %vm163, 0.0
      %212 = vst.msk [vmem:[#allocation6] sm:$0xff] %vm163, 0.0
      %213 = vst.msk [vmem:[#allocation6 + $0x8] sm:$0xff] %vm163, 0.0
      %214 = vst.msk [vmem:[#allocation6 + $0x10] sm:$0xff] %vm163, 0.0
      %215 = vst.msk [vmem:[#allocation6 + $0x18] sm:$0xff] %vm163, 0.0
    $region37: #{tpu_custom_call.1} parent=1 // pred_fallthru
      _
    %v216 = vld [vmem:[#allocation12] sm:$0xff]
    %v217 = vld [vmem:[#allocation12 + $0x8] sm:$0xff]
    %v218 = vld [vmem:[#allocation12 + $0x10] sm:$0xff]
    %v219 = vld [vmem:[#allocation12 + $0x18] sm:$0xff]
    %v220 = vld [vmem:[#allocation12 + $0x20] sm:$0xff]
    %v221 = vld [vmem:[#allocation12 + $0x28] sm:$0xff]
    %v222 = vld [vmem:[#allocation12 + $0x30] sm:$0xff]
    %v223 = vld [vmem:[#allocation12 + $0x38] sm:$0xff]
    %v224 = vld [vmem:[#allocation12 + $0x40] sm:$0xff]
    %v225 = vld [vmem:[#allocation12 + $0x48] sm:$0xff]
    %v226 = vld [vmem:[#allocation12 + $0x50] sm:$0xff]
    %v227 = vld [vmem:[#allocation12 + $0x58] sm:$0xff]
    %v228 = vld [vmem:[#allocation12 + $0x60] sm:$0xff]
    %v229 = vld [vmem:[#allocation12 + $0x68] sm:$0xff]
    %v230 = vld [vmem:[#allocation12 + $0x70] sm:$0xff]
    %v231 = vld [vmem:[#allocation12 + $0x78] sm:$0xff]
    %v232 = vld [vmem:[#allocation13] sm:$0xff]
    %v233 = vunpack.c.0.s8 %v232
    %v234 = vunpack.c.1.s8 %v232
    %v235 = vunpack.c.2.s8 %v232
    %v236 = vunpack.c.3.s8 %v232
    %v237 = vcvt.s32.f32 %v233
    %v238 = vcvt.s32.f32 %v234
    %v239 = vcvt.s32.f32 %v235
    %v240 = vcvt.s32.f32 %v236
    %v241 = vand.u32 %v231, 4294901760
    %242 = vmatpush.xpose.msra.mxu0 %v241
    %v243 = vand.u32 %v230, 4294901760
    %244 = vmatpush.xpose.msra.mxu0 %v243
    %v245 = vand.u32 %v229, 4294901760
    %246 = vmatpush.xpose.msra.mxu0 %v245
    %v247 = vand.u32 %v228, 4294901760
    %248 = vmatpush.xpose.msra.mxu0 %v247
    %v249 = vand.u32 %v227, 4294901760
    %250 = vmatpush.xpose.msra.mxu0 %v249
    %v251 = vand.u32 %v226, 4294901760
    %252 = vmatpush.xpose.msra.mxu0 %v251
    %v253 = vand.u32 %v225, 4294901760
    %254 = vmatpush.xpose.msra.mxu0 %v253
    %v255 = vand.u32 %v224, 4294901760
    %256 = vmatpush.xpose.msra.mxu0 %v255
    %v257 = vand.u32 %v223, 4294901760
    %258 = vmatpush.xpose.msra.mxu0 %v257
    %v259 = vand.u32 %v222, 4294901760
    %260 = vmatpush.xpose.msra.mxu0 %v259
    %v261 = vand.u32 %v221, 4294901760
    %262 = vmatpush.xpose.msra.mxu0 %v261
    %v263 = vand.u32 %v220, 4294901760
    %264 = vmatpush.xpose.msra.mxu0 %v263
    %v265 = vand.u32 %v219, 4294901760
    %266 = vmatpush.xpose.msra.mxu0 %v265
    %v267 = vand.u32 %v218, 4294901760
    %268 = vmatpush.xpose.msra.mxu0 %v267
    %v269 = vand.u32 %v217, 4294901760
    %270 = vmatpush.xpose.msra.mxu0 %v269
    %v271 = vand.u32 %v216, 4294901760
    %272 = vmatpush.xpose.msra.mxu0 %v271
    %v273 = vand.u32 %v79, 4294901760
    %v274 = vsub.f32 %v79, %v273
    %v275 = vand.u32 %v274, 4294901760
    %v276 = vsub.f32 %v274, %v275
    %v277 = vand.u32 %v276, 4294901760
    %278 = vmatmul.f32.gmra.mxu0 %v277
    %v279 = vpop.f32.mrf.mxu0
    %v280 = vadd.f32 0.0, %v279
    %v281 = vand.u32 %v80, 4294901760
    %v282 = vsub.f32 %v80, %v281
    %v283 = vand.u32 %v282, 4294901760
    %v284 = vsub.f32 %v282, %v283
    %v285 = vand.u32 %v284, 4294901760
    %286 = vmatmul.f32.gmra.mxu0 %v285
    %v287 = vpop.f32.mrf.mxu0
    %v288 = vadd.f32 0.0, %v287
    %v289 = vand.u32 %v81, 4294901760
    %v290 = vsub.f32 %v81, %v289
    %v291 = vand.u32 %v290, 4294901760
    %v292 = vsub.f32 %v290, %v291
    %v293 = vand.u32 %v292, 4294901760
    %294 = vmatmul.f32.gmra.mxu0 %v293
    %v295 = vpop.f32.mrf.mxu0
    %v296 = vadd.f32 0.0, %v295
    %v297 = vand.u32 %v82, 4294901760
    %v298 = vsub.f32 %v82, %v297
    %v299 = vand.u32 %v298, 4294901760
    %v300 = vsub.f32 %v298, %v299
    %v301 = vand.u32 %v300, 4294901760
    %302 = vmatmul.f32.gmra.mxu0 %v301
    %v303 = vpop.f32.mrf.mxu0
    %v304 = vadd.f32 0.0, %v303
    %305 = vdwg.mxu0
    %v306 = vand.u32 %v231, 4294901760
    %v307 = vsub.f32 %v231, %v306
    %v308 = vand.u32 %v307, 4294901760
    %v309 = vsub.f32 %v307, %v308
    %v310 = vand.u32 %v309, 4294901760
    %311 = vmatpush.xpose.msra.mxu0 %v310
    %v312 = vand.u32 %v230, 4294901760
    %v313 = vsub.f32 %v230, %v312
    %v314 = vand.u32 %v313, 4294901760
    %v315 = vsub.f32 %v313, %v314
    %v316 = vand.u32 %v315, 4294901760
    %317 = vmatpush.xpose.msra.mxu0 %v316
    %v318 = vand.u32 %v229, 4294901760
    %v319 = vsub.f32 %v229, %v318
    %v320 = vand.u32 %v319, 4294901760
    %v321 = vsub.f32 %v319, %v320
    %v322 = vand.u32 %v321, 4294901760
    %323 = vmatpush.xpose.msra.mxu0 %v322
    %v324 = vand.u32 %v228, 4294901760
    %v325 = vsub.f32 %v228, %v324
    %v326 = vand.u32 %v325, 4294901760
    %v327 = vsub.f32 %v325, %v326
    %v328 = vand.u32 %v327, 4294901760
    %329 = vmatpush.xpose.msra.mxu0 %v328
    %v330 = vand.u32 %v227, 4294901760
    %v331 = vsub.f32 %v227, %v330
    %v332 = vand.u32 %v331, 4294901760
    %v333 = vsub.f32 %v331, %v332
    %v334 = vand.u32 %v333, 4294901760
    %335 = vmatpush.xpose.msra.mxu0 %v334
    %v336 = vand.u32 %v226, 4294901760
    %v337 = vsub.f32 %v226, %v336
    %v338 = vand.u32 %v337, 4294901760
    %v339 = vsub.f32 %v337, %v338
    %v340 = vand.u32 %v339, 4294901760
    %341 = vmatpush.xpose.msra.mxu0 %v340
    %v342 = vand.u32 %v225, 4294901760
    %v343 = vsub.f32 %v225, %v342
    %v344 = vand.u32 %v343, 4294901760
    %v345 = vsub.f32 %v343, %v344
    %v346 = vand.u32 %v345, 4294901760
    %347 = vmatpush.xpose.msra.mxu0 %v346
    %v348 = vand.u32 %v224, 4294901760
    %v349 = vsub.f32 %v224, %v348
    %v350 = vand.u32 %v349, 4294901760
    %v351 = vsub.f32 %v349, %v350
    %v352 = vand.u32 %v351, 4294901760
    %353 = vmatpush.xpose.msra.mxu0 %v352
    %v354 = vand.u32 %v223, 4294901760
    %v355 = vsub.f32 %v223, %v354
    %v356 = vand.u32 %v355, 4294901760
    %v357 = vsub.f32 %v355, %v356
    %v358 = vand.u32 %v357, 4294901760
    %359 = vmatpush.xpose.msra.mxu0 %v358
    %v360 = vand.u32 %v222, 4294901760
    %v361 = vsub.f32 %v222, %v360
    %v362 = vand.u32 %v361, 4294901760
    %v363 = vsub.f32 %v361, %v362
    %v364 = vand.u32 %v363, 4294901760
    %365 = vmatpush.xpose.msra.mxu0 %v364
    %v366 = vand.u32 %v221, 4294901760
    %v367 = vsub.f32 %v221, %v366
    %v368 = vand.u32 %v367, 4294901760
    %v369 = vsub.f32 %v367, %v368
    %v370 = vand.u32 %v369, 4294901760
    %371 = vmatpush.xpose.msra.mxu0 %v370
    %v372 = vand.u32 %v220, 4294901760
    %v373 = vsub.f32 %v220, %v372
    %v374 = vand.u32 %v373, 4294901760
    %v375 = vsub.f32 %v373, %v374
    %v376 = vand.u32 %v375, 4294901760
    %377 = vmatpush.xpose.msra.mxu0 %v376
    %v378 = vand.u32 %v219, 4294901760
    %v379 = vsub.f32 %v219, %v378
    %v380 = vand.u32 %v379, 4294901760
    %v381 = vsub.f32 %v379, %v380
    %v382 = vand.u32 %v381, 4294901760
    %383 = vmatpush.xpose.msra.mxu0 %v382
    %v384 = vand.u32 %v218, 4294901760
    %v385 = vsub.f32 %v218, %v384
    %v386 = vand.u32 %v385, 4294901760
    %v387 = vsub.f32 %v385, %v386
    %v388 = vand.u32 %v387, 4294901760
    %389 = vmatpush.xpose.msra.mxu0 %v388
    %v390 = vand.u32 %v217, 4294901760
    %v391 = vsub.f32 %v217, %v390
    %v392 = vand.u32 %v391, 4294901760
    %v393 = vsub.f32 %v391, %v392
    %v394 = vand.u32 %v393, 4294901760
    %395 = vmatpush.xpose.msra.mxu0 %v394
    %v396 = vand.u32 %v216, 4294901760
    %v397 = vsub.f32 %v216, %v396
    %v398 = vand.u32 %v397, 4294901760
    %v399 = vsub.f32 %v397, %v398
    %v400 = vand.u32 %v399, 4294901760
    %401 = vmatpush.xpose.msra.mxu0 %v400
    %v402 = vand.u32 %v79, 4294901760
    %403 = vmatmul.f32.gmra.mxu0 %v402
    %v404 = vpop.f32.mrf.mxu0
    %v405 = vadd.f32 %v280, %v404
    %v406 = vand.u32 %v80, 4294901760
    %407 = vmatmul.f32.gmra.mxu0 %v406
    %v408 = vpop.f32.mrf.mxu0
    %v409 = vadd.f32 %v288, %v408
    %v410 = vand.u32 %v81, 4294901760
    %411 = vmatmul.f32.gmra.mxu0 %v410
    %v412 = vpop.f32.mrf.mxu0
    %v413 = vadd.f32 %v296, %v412
    %v414 = vand.u32 %v82, 4294901760
    %415 = vmatmul.f32.gmra.mxu0 %v414
    %v416 = vpop.f32.mrf.mxu0
    %v417 = vadd.f32 %v304, %v416
    %418 = vdwg.mxu0
    %v419 = vand.u32 %v231, 4294901760
    %v420 = vsub.f32 %v231, %v419
    %421 = vmatpush.xpose.msra.mxu0 %v420
    %v422 = vand.u32 %v230, 4294901760
    %v423 = vsub.f32 %v230, %v422
    %424 = vmatpush.xpose.msra.mxu0 %v423
    %v425 = vand.u32 %v229, 4294901760
    %v426 = vsub.f32 %v229, %v425
    %427 = vmatpush.xpose.msra.mxu0 %v426
    %v428 = vand.u32 %v228, 4294901760
    %v429 = vsub.f32 %v228, %v428
    %430 = vmatpush.xpose.msra.mxu0 %v429
    %v431 = vand.u32 %v227, 4294901760
    %v432 = vsub.f32 %v227, %v431
    %433 = vmatpush.xpose.msra.mxu0 %v432
    %v434 = vand.u32 %v226, 4294901760
    %v435 = vsub.f32 %v226, %v434
    %436 = vmatpush.xpose.msra.mxu0 %v435
    %v437 = vand.u32 %v225, 4294901760
    %v438 = vsub.f32 %v225, %v437
    %439 = vmatpush.xpose.msra.mxu0 %v438
    %v440 = vand.u32 %v224, 4294901760
    %v441 = vsub.f32 %v224, %v440
    %442 = vmatpush.xpose.msra.mxu0 %v441
    %v443 = vand.u32 %v223, 4294901760
    %v444 = vsub.f32 %v223, %v443
    %445 = vmatpush.xpose.msra.mxu0 %v444
    %v446 = vand.u32 %v222, 4294901760
    %v447 = vsub.f32 %v222, %v446
    %448 = vmatpush.xpose.msra.mxu0 %v447
    %v449 = vand.u32 %v221, 4294901760
    %v450 = vsub.f32 %v221, %v449
    %451 = vmatpush.xpose.msra.mxu0 %v450
    %v452 = vand.u32 %v220, 4294901760
    %v453 = vsub.f32 %v220, %v452
    %454 = vmatpush.xpose.msra.mxu0 %v453
    %v455 = vand.u32 %v219, 4294901760
    %v456 = vsub.f32 %v219, %v455
    %457 = vmatpush.xpose.msra.mxu0 %v456
    %v458 = vand.u32 %v218, 4294901760
    %v459 = vsub.f32 %v218, %v458
    %460 = vmatpush.xpose.msra.mxu0 %v459
    %v461 = vand.u32 %v217, 4294901760
    %v462 = vsub.f32 %v217, %v461
    %463 = vmatpush.xpose.msra.mxu0 %v462
    %v464 = vand.u32 %v216, 4294901760
    %v465 = vsub.f32 %v216, %v464
    %466 = vmatpush.xpose.msra.mxu0 %v465
    %v467 = vand.u32 %v79, 4294901760
    %v468 = vsub.f32 %v79, %v467
    %469 = vmatmul.f32.gmra.mxu0 %v468
    %v470 = vpop.f32.mrf.mxu0
    %v471 = vadd.f32 %v405, %v470
    %v472 = vand.u32 %v80, 4294901760
    %v473 = vsub.f32 %v80, %v472
    %474 = vmatmul.f32.gmra.mxu0 %v473
    %v475 = vpop.f32.mrf.mxu0
    %v476 = vadd.f32 %v409, %v475
    %v477 = vand.u32 %v81, 4294901760
    %v478 = vsub.f32 %v81, %v477
    %479 = vmatmul.f32.gmra.mxu0 %v478
    %v480 = vpop.f32.mrf.mxu0
    %v481 = vadd.f32 %v413, %v480
    %v482 = vand.u32 %v82, 4294901760
    %v483 = vsub.f32 %v82, %v482
    %484 = vmatmul.f32.gmra.mxu0 %v483
    %v485 = vpop.f32.mrf.mxu0
    %v486 = vadd.f32 %v417, %v485
    %487 = vdwg.mxu0
    %v488 = vand.u32 %v231, 4294901760
    %489 = vmatpush.xpose.msra.mxu0 %v488
    %v490 = vand.u32 %v230, 4294901760
    %491 = vmatpush.xpose.msra.mxu0 %v490
    %v492 = vand.u32 %v229, 4294901760
    %493 = vmatpush.xpose.msra.mxu0 %v492
    %v494 = vand.u32 %v228, 4294901760
    %495 = vmatpush.xpose.msra.mxu0 %v494
    %v496 = vand.u32 %v227, 4294901760
    %497 = vmatpush.xpose.msra.mxu0 %v496
    %v498 = vand.u32 %v226, 4294901760
    %499 = vmatpush.xpose.msra.mxu0 %v498
    %v500 = vand.u32 %v225, 4294901760
    %501 = vmatpush.xpose.msra.mxu0 %v500
    %v502 = vand.u32 %v224, 4294901760
    %503 = vmatpush.xpose.msra.mxu0 %v502
    %v504 = vand.u32 %v223, 4294901760
    %505 = vmatpush.xpose.msra.mxu0 %v504
    %v506 = vand.u32 %v222, 4294901760
    %507 = vmatpush.xpose.msra.mxu0 %v506
    %v508 = vand.u32 %v221, 4294901760
    %509 = vmatpush.xpose.msra.mxu0 %v508
    %v510 = vand.u32 %v220, 4294901760
    %511 = vmatpush.xpose.msra.mxu0 %v510
    %v512 = vand.u32 %v219, 4294901760
    %513 = vmatpush.xpose.msra.mxu0 %v512
    %v514 = vand.u32 %v218, 4294901760
    %515 = vmatpush.xpose.msra.mxu0 %v514
    %v516 = vand.u32 %v217, 4294901760
    %517 = vmatpush.xpose.msra.mxu0 %v516
    %v518 = vand.u32 %v216, 4294901760
    %519 = vmatpush.xpose.msra.mxu0 %v518
    %v520 = vand.u32 %v79, 4294901760
    %v521 = vsub.f32 %v79, %v520
    %v522 = vand.u32 %v521, 4294901760
    %523 = vmatmul.f32.gmra.mxu0 %v522
    %v524 = vpop.f32.mrf.mxu0
    %v525 = vadd.f32 %v471, %v524
    %v526 = vand.u32 %v80, 4294901760
    %v527 = vsub.f32 %v80, %v526
    %v528 = vand.u32 %v527, 4294901760
    %529 = vmatmul.f32.gmra.mxu0 %v528
    %v530 = vpop.f32.mrf.mxu0
    %v531 = vadd.f32 %v476, %v530
    %v532 = vand.u32 %v81, 4294901760
    %v533 = vsub.f32 %v81, %v532
    %v534 = vand.u32 %v533, 4294901760
    %535 = vmatmul.f32.gmra.mxu0 %v534
    %v536 = vpop.f32.mrf.mxu0
    %v537 = vadd.f32 %v481, %v536
    %v538 = vand.u32 %v82, 4294901760
    %v539 = vsub.f32 %v82, %v538
    %v540 = vand.u32 %v539, 4294901760
    %541 = vmatmul.f32.gmra.mxu0 %v540
    %v542 = vpop.f32.mrf.mxu0
    %v543 = vadd.f32 %v486, %v542
    %544 = vdwg.mxu0
    %v545 = vand.u32 %v231, 4294901760
    %v546 = vsub.f32 %v231, %v545
    %v547 = vand.u32 %v546, 4294901760
    %548 = vmatpush.xpose.msra.mxu0 %v547
    %v549 = vand.u32 %v230, 4294901760
    %v550 = vsub.f32 %v230, %v549
    %v551 = vand.u32 %v550, 4294901760
    %552 = vmatpush.xpose.msra.mxu0 %v551
    %v553 = vand.u32 %v229, 4294901760
    %v554 = vsub.f32 %v229, %v553
    %v555 = vand.u32 %v554, 4294901760
    %556 = vmatpush.xpose.msra.mxu0 %v555
    %v557 = vand.u32 %v228, 4294901760
    %v558 = vsub.f32 %v228, %v557
    %v559 = vand.u32 %v558, 4294901760
    %560 = vmatpush.xpose.msra.mxu0 %v559
    %v561 = vand.u32 %v227, 4294901760
    %v562 = vsub.f32 %v227, %v561
    %v563 = vand.u32 %v562, 4294901760
    %564 = vmatpush.xpose.msra.mxu0 %v563
    %v565 = vand.u32 %v226, 4294901760
    %v566 = vsub.f32 %v226, %v565
    %v567 = vand.u32 %v566, 4294901760
    %568 = vmatpush.xpose.msra.mxu0 %v567
    %v569 = vand.u32 %v225, 4294901760
    %v570 = vsub.f32 %v225, %v569
    %v571 = vand.u32 %v570, 4294901760
    %572 = vmatpush.xpose.msra.mxu0 %v571
    %v573 = vand.u32 %v224, 4294901760
    %v574 = vsub.f32 %v224, %v573
    %v575 = vand.u32 %v574, 4294901760
    %576 = vmatpush.xpose.msra.mxu0 %v575
    %v577 = vand.u32 %v223, 4294901760
    %v578 = vsub.f32 %v223, %v577
    %v579 = vand.u32 %v578, 4294901760
    %580 = vmatpush.xpose.msra.mxu0 %v579
    %v581 = vand.u32 %v222, 4294901760
    %v582 = vsub.f32 %v222, %v581
    %v583 = vand.u32 %v582, 4294901760
    %584 = vmatpush.xpose.msra.mxu0 %v583
    %v585 = vand.u32 %v221, 4294901760
    %v586 = vsub.f32 %v221, %v585
    %v587 = vand.u32 %v586, 4294901760
    %588 = vmatpush.xpose.msra.mxu0 %v587
    %v589 = vand.u32 %v220, 4294901760
    %v590 = vsub.f32 %v220, %v589
    %v591 = vand.u32 %v590, 4294901760
    %592 = vmatpush.xpose.msra.mxu0 %v591
    %v593 = vand.u32 %v219, 4294901760
    %v594 = vsub.f32 %v219, %v593
    %v595 = vand.u32 %v594, 4294901760
    %596 = vmatpush.xpose.msra.mxu0 %v595
    %v597 = vand.u32 %v218, 4294901760
    %v598 = vsub.f32 %v218, %v597
    %v599 = vand.u32 %v598, 4294901760
    %600 = vmatpush.xpose.msra.mxu0 %v599
    %v601 = vand.u32 %v217, 4294901760
    %v602 = vsub.f32 %v217, %v601
    %v603 = vand.u32 %v602, 4294901760
    %604 = vmatpush.xpose.msra.mxu0 %v603
    %v605 = vand.u32 %v216, 4294901760
    %v606 = vsub.f32 %v216, %v605
    %v607 = vand.u32 %v606, 4294901760
    %608 = vmatpush.xpose.msra.mxu0 %v607
    %v609 = vand.u32 %v79, 4294901760
    %610 = vmatmul.f32.gmra.mxu0 %v609
    %v611 = vpop.f32.mrf.mxu0
    %v612 = vadd.f32 %v525, %v611
    %v613 = vand.u32 %v80, 4294901760
    %614 = vmatmul.f32.gmra.mxu0 %v613
    %v615 = vpop.f32.mrf.mxu0
    %v616 = vadd.f32 %v531, %v615
    %v617 = vand.u32 %v81, 4294901760
    %618 = vmatmul.f32.gmra.mxu0 %v617
    %v619 = vpop.f32.mrf.mxu0
    %v620 = vadd.f32 %v537, %v619
    %v621 = vand.u32 %v82, 4294901760
    %622 = vmatmul.f32.gmra.mxu0 %v621
    %v623 = vpop.f32.mrf.mxu0
    %v624 = vadd.f32 %v543, %v623
    %625 = vdwg.mxu0
    %v626 = vand.u32 %v231, 4294901760
    %627 = vmatpush.xpose.msra.mxu0 %v626
    %v628 = vand.u32 %v230, 4294901760
    %629 = vmatpush.xpose.msra.mxu0 %v628
    %v630 = vand.u32 %v229, 4294901760
    %631 = vmatpush.xpose.msra.mxu0 %v630
    %v632 = vand.u32 %v228, 4294901760
    %633 = vmatpush.xpose.msra.mxu0 %v632
    %v634 = vand.u32 %v227, 4294901760
    %635 = vmatpush.xpose.msra.mxu0 %v634
    %v636 = vand.u32 %v226, 4294901760
    %637 = vmatpush.xpose.msra.mxu0 %v636
    %v638 = vand.u32 %v225, 4294901760
    %639 = vmatpush.xpose.msra.mxu0 %v638
    %v640 = vand.u32 %v224, 4294901760
    %641 = vmatpush.xpose.msra.mxu0 %v640
    %v642 = vand.u32 %v223, 4294901760
    %643 = vmatpush.xpose.msra.mxu0 %v642
    %v644 = vand.u32 %v222, 4294901760
    %645 = vmatpush.xpose.msra.mxu0 %v644
    %v646 = vand.u32 %v221, 4294901760
    %647 = vmatpush.xpose.msra.mxu0 %v646
    %v648 = vand.u32 %v220, 4294901760
    %649 = vmatpush.xpose.msra.mxu0 %v648
    %v650 = vand.u32 %v219, 4294901760
    %651 = vmatpush.xpose.msra.mxu0 %v650
    %v652 = vand.u32 %v218, 4294901760
    %653 = vmatpush.xpose.msra.mxu0 %v652
    %v654 = vand.u32 %v217, 4294901760
    %655 = vmatpush.xpose.msra.mxu0 %v654
    %v656 = vand.u32 %v216, 4294901760
    %657 = vmatpush.xpose.msra.mxu0 %v656
    %v658 = vand.u32 %v79, 4294901760
    %659 = vmatmul.f32.gmra.mxu0 %v658
    %v660 = vpop.f32.mrf.mxu0
    %v661 = vadd.f32 %v612, %v660
    %v662 = vand.u32 %v80, 4294901760
    %663 = vmatmul.f32.gmra.mxu0 %v662
    %v664 = vpop.f32.mrf.mxu0
    %v665 = vadd.f32 %v616, %v664
    %v666 = vand.u32 %v81, 4294901760
    %667 = vmatmul.f32.gmra.mxu0 %v666
    %v668 = vpop.f32.mrf.mxu0
    %v669 = vadd.f32 %v620, %v668
    %v670 = vand.u32 %v82, 4294901760
    %671 = vmatmul.f32.gmra.mxu0 %v670
    %v672 = vpop.f32.mrf.mxu0
    %v673 = vadd.f32 %v624, %v672
    %674 = vdwg.mxu0
    %v675 = vsub.f32 %v216, 1e-06
    %v676 = vsub.f32 %v217, 1e-06
    %v677 = vsub.f32 %v218, 1e-06
    %v678 = vsub.f32 %v219, 1e-06
    %v679 = vsub.f32 %v220, 1e-06
    %v680 = vsub.f32 %v221, 1e-06
    %v681 = vsub.f32 %v222, 1e-06
    %v682 = vsub.f32 %v223, 1e-06
    %v683 = vsub.f32 %v224, 1e-06
    %v684 = vsub.f32 %v225, 1e-06
    %v685 = vsub.f32 %v226, 1e-06
    %v686 = vsub.f32 %v227, 1e-06
    %v687 = vsub.f32 %v228, 1e-06
    %v688 = vsub.f32 %v229, 1e-06
    %v689 = vsub.f32 %v230, 1e-06
    %v690 = vsub.f32 %v231, 1e-06
    %v691 = vmul.f32 %v675, %v675
    %v692 = vmul.f32 %v676, %v676
    %v693 = vmul.f32 %v677, %v677
    %v694 = vmul.f32 %v678, %v678
    %v695 = vmul.f32 %v679, %v679
    %v696 = vmul.f32 %v680, %v680
    %v697 = vmul.f32 %v681, %v681
    %v698 = vmul.f32 %v682, %v682
    %v699 = vmul.f32 %v683, %v683
    %v700 = vmul.f32 %v684, %v684
    %v701 = vmul.f32 %v685, %v685
    %v702 = vmul.f32 %v686, %v686
    %v703 = vmul.f32 %v687, %v687
    %v704 = vmul.f32 %v688, %v688
    %v705 = vmul.f32 %v689, %v689
    %v706 = vmul.f32 %v690, %v690
    %v707 = vand.u32 %v706, 4294901760
    %708 = vmatpush.xpose.msra.mxu0 %v707
    %v709 = vand.u32 %v705, 4294901760
    %710 = vmatpush.xpose.msra.mxu0 %v709
    %v711 = vand.u32 %v704, 4294901760
    %712 = vmatpush.xpose.msra.mxu0 %v711
    %v713 = vand.u32 %v703, 4294901760
    %714 = vmatpush.xpose.msra.mxu0 %v713
    %v715 = vand.u32 %v702, 4294901760
    %716 = vmatpush.xpose.msra.mxu0 %v715
    %v717 = vand.u32 %v701, 4294901760
    %718 = vmatpush.xpose.msra.mxu0 %v717
    %v719 = vand.u32 %v700, 4294901760
    %720 = vmatpush.xpose.msra.mxu0 %v719
    %v721 = vand.u32 %v699, 4294901760
    %722 = vmatpush.xpose.msra.mxu0 %v721
    %v723 = vand.u32 %v698, 4294901760
    %724 = vmatpush.xpose.msra.mxu0 %v723
    %v725 = vand.u32 %v697, 4294901760
    %726 = vmatpush.xpose.msra.mxu0 %v725
    %v727 = vand.u32 %v696, 4294901760
    %728 = vmatpush.xpose.msra.mxu0 %v727
    %v729 = vand.u32 %v695, 4294901760
    %730 = vmatpush.xpose.msra.mxu0 %v729
    %v731 = vand.u32 %v694, 4294901760
    %732 = vmatpush.xpose.msra.mxu0 %v731
    %v733 = vand.u32 %v693, 4294901760
    %734 = vmatpush.xpose.msra.mxu0 %v733
    %v735 = vand.u32 %v692, 4294901760
    %736 = vmatpush.xpose.msra.mxu0 %v735
    %v737 = vand.u32 %v691, 4294901760
    %738 = vmatpush.xpose.msra.mxu0 %v737
    %739 = vmatmul.f32.gmra.mxu0 0.0
    %v740 = vpop.f32.mrf.mxu0
    %v741 = vadd.f32 0.0, %v740
    %742 = vdwg.mxu0
    %v743 = vand.u32 %v706, 4294901760
    %v744 = vsub.f32 %v706, %v743
    %v745 = vand.u32 %v744, 4294901760
    %v746 = vsub.f32 %v744, %v745
    %v747 = vand.u32 %v746, 4294901760
    %748 = vmatpush.xpose.msra.mxu0 %v747
    %v749 = vand.u32 %v705, 4294901760
    %v750 = vsub.f32 %v705, %v749
    %v751 = vand.u32 %v750, 4294901760
    %v752 = vsub.f32 %v750, %v751
    %v753 = vand.u32 %v752, 4294901760
    %754 = vmatpush.xpose.msra.mxu0 %v753
    %v755 = vand.u32 %v704, 4294901760
    %v756 = vsub.f32 %v704, %v755
    %v757 = vand.u32 %v756, 4294901760
    %v758 = vsub.f32 %v756, %v757
    %v759 = vand.u32 %v758, 4294901760
    %760 = vmatpush.xpose.msra.mxu0 %v759
    %v761 = vand.u32 %v703, 4294901760
    %v762 = vsub.f32 %v703, %v761
    %v763 = vand.u32 %v762, 4294901760
    %v764 = vsub.f32 %v762, %v763
    %v765 = vand.u32 %v764, 4294901760
    %766 = vmatpush.xpose.msra.mxu0 %v765
    %v767 = vand.u32 %v702, 4294901760
    %v768 = vsub.f32 %v702, %v767
    %v769 = vand.u32 %v768, 4294901760
    %v770 = vsub.f32 %v768, %v769
    %v771 = vand.u32 %v770, 4294901760
    %772 = vmatpush.xpose.msra.mxu0 %v771
    %v773 = vand.u32 %v701, 4294901760
    %v774 = vsub.f32 %v701, %v773
    %v775 = vand.u32 %v774, 4294901760
    %v776 = vsub.f32 %v774, %v775
    %v777 = vand.u32 %v776, 4294901760
    %778 = vmatpush.xpose.msra.mxu0 %v777
    %v779 = vand.u32 %v700, 4294901760
    %v780 = vsub.f32 %v700, %v779
    %v781 = vand.u32 %v780, 4294901760
    %v782 = vsub.f32 %v780, %v781
    %v783 = vand.u32 %v782, 4294901760
    %784 = vmatpush.xpose.msra.mxu0 %v783
    %v785 = vand.u32 %v699, 4294901760
    %v786 = vsub.f32 %v699, %v785
    %v787 = vand.u32 %v786, 4294901760
    %v788 = vsub.f32 %v786, %v787
    %v789 = vand.u32 %v788, 4294901760
    %790 = vmatpush.xpose.msra.mxu0 %v789
    %v791 = vand.u32 %v698, 4294901760
    %v792 = vsub.f32 %v698, %v791
    %v793 = vand.u32 %v792, 4294901760
    %v794 = vsub.f32 %v792, %v793
    %v795 = vand.u32 %v794, 4294901760
    %796 = vmatpush.xpose.msra.mxu0 %v795
    %v797 = vand.u32 %v697, 4294901760
    %v798 = vsub.f32 %v697, %v797
    %v799 = vand.u32 %v798, 4294901760
    %v800 = vsub.f32 %v798, %v799
    %v801 = vand.u32 %v800, 4294901760
    %802 = vmatpush.xpose.msra.mxu0 %v801
    %v803 = vand.u32 %v696, 4294901760
    %v804 = vsub.f32 %v696, %v803
    %v805 = vand.u32 %v804, 4294901760
    %v806 = vsub.f32 %v804, %v805
    %v807 = vand.u32 %v806, 4294901760
    %808 = vmatpush.xpose.msra.mxu0 %v807
    %v809 = vand.u32 %v695, 4294901760
    %v810 = vsub.f32 %v695, %v809
    %v811 = vand.u32 %v810, 4294901760
    %v812 = vsub.f32 %v810, %v811
    %v813 = vand.u32 %v812, 4294901760
    %814 = vmatpush.xpose.msra.mxu0 %v813
    %v815 = vand.u32 %v694, 4294901760
    %v816 = vsub.f32 %v694, %v815
    %v817 = vand.u32 %v816, 4294901760
    %v818 = vsub.f32 %v816, %v817
    %v819 = vand.u32 %v818, 4294901760
    %820 = vmatpush.xpose.msra.mxu0 %v819
    %v821 = vand.u32 %v693, 4294901760
    %v822 = vsub.f32 %v693, %v821
    %v823 = vand.u32 %v822, 4294901760
    %v824 = vsub.f32 %v822, %v823
    %v825 = vand.u32 %v824, 4294901760
    %826 = vmatpush.xpose.msra.mxu0 %v825
    %v827 = vand.u32 %v692, 4294901760
    %v828 = vsub.f32 %v692, %v827
    %v829 = vand.u32 %v828, 4294901760
    %v830 = vsub.f32 %v828, %v829
    %v831 = vand.u32 %v830, 4294901760
    %832 = vmatpush.xpose.msra.mxu0 %v831
    %v833 = vand.u32 %v691, 4294901760
    %v834 = vsub.f32 %v691, %v833
    %v835 = vand.u32 %v834, 4294901760
    %v836 = vsub.f32 %v834, %v835
    %v837 = vand.u32 %v836, 4294901760
    %838 = vmatpush.xpose.msra.mxu0 %v837
    %839 = vmatmul.f32.gmra.mxu0 1.0
    %v840 = vpop.f32.mrf.mxu0
    %v841 = vadd.f32 %v741, %v840
    %842 = vdwg.mxu0
    %v843 = vand.u32 %v706, 4294901760
    %v844 = vsub.f32 %v706, %v843
    %845 = vmatpush.xpose.msra.mxu0 %v844
    %v846 = vand.u32 %v705, 4294901760
    %v847 = vsub.f32 %v705, %v846
    %848 = vmatpush.xpose.msra.mxu0 %v847
    %v849 = vand.u32 %v704, 4294901760
    %v850 = vsub.f32 %v704, %v849
    %851 = vmatpush.xpose.msra.mxu0 %v850
    %v852 = vand.u32 %v703, 4294901760
    %v853 = vsub.f32 %v703, %v852
    %854 = vmatpush.xpose.msra.mxu0 %v853
    %v855 = vand.u32 %v702, 4294901760
    %v856 = vsub.f32 %v702, %v855
    %857 = vmatpush.xpose.msra.mxu0 %v856
    %v858 = vand.u32 %v701, 4294901760
    %v859 = vsub.f32 %v701, %v858
    %860 = vmatpush.xpose.msra.mxu0 %v859
    %v861 = vand.u32 %v700, 4294901760
    %v862 = vsub.f32 %v700, %v861
    %863 = vmatpush.xpose.msra.mxu0 %v862
    %v864 = vand.u32 %v699, 4294901760
    %v865 = vsub.f32 %v699, %v864
    %866 = vmatpush.xpose.msra.mxu0 %v865
    %v867 = vand.u32 %v698, 4294901760
    %v868 = vsub.f32 %v698, %v867
    %869 = vmatpush.xpose.msra.mxu0 %v868
    %v870 = vand.u32 %v697, 4294901760
    %v871 = vsub.f32 %v697, %v870
    %872 = vmatpush.xpose.msra.mxu0 %v871
    %v873 = vand.u32 %v696, 4294901760
    %v874 = vsub.f32 %v696, %v873
    %875 = vmatpush.xpose.msra.mxu0 %v874
    %v876 = vand.u32 %v695, 4294901760
    %v877 = vsub.f32 %v695, %v876
    %878 = vmatpush.xpose.msra.mxu0 %v877
    %v879 = vand.u32 %v694, 4294901760
    %v880 = vsub.f32 %v694, %v879
    %881 = vmatpush.xpose.msra.mxu0 %v880
    %v882 = vand.u32 %v693, 4294901760
    %v883 = vsub.f32 %v693, %v882
    %884 = vmatpush.xpose.msra.mxu0 %v883
    %v885 = vand.u32 %v692, 4294901760
    %v886 = vsub.f32 %v692, %v885
    %887 = vmatpush.xpose.msra.mxu0 %v886
    %v888 = vand.u32 %v691, 4294901760
    %v889 = vsub.f32 %v691, %v888
    %890 = vmatpush.xpose.msra.mxu0 %v889
    %891 = vmatmul.f32.gmra.mxu0 0.0
    %v892 = vpop.f32.mrf.mxu0
    %v893 = vadd.f32 %v841, %v892
    %894 = vdwg.mxu0
    %v895 = vand.u32 %v706, 4294901760
    %896 = vmatpush.xpose.msra.mxu0 %v895
    %v897 = vand.u32 %v705, 4294901760
    %898 = vmatpush.xpose.msra.mxu0 %v897
    %v899 = vand.u32 %v704, 4294901760
    %900 = vmatpush.xpose.msra.mxu0 %v899
    %v901 = vand.u32 %v703, 4294901760
    %902 = vmatpush.xpose.msra.mxu0 %v901
    %v903 = vand.u32 %v702, 4294901760
    %904 = vmatpush.xpose.msra.mxu0 %v903
    %v905 = vand.u32 %v701, 4294901760
    %906 = vmatpush.xpose.msra.mxu0 %v905
    %v907 = vand.u32 %v700, 4294901760
    %908 = vmatpush.xpose.msra.mxu0 %v907
    %v909 = vand.u32 %v699, 4294901760
    %910 = vmatpush.xpose.msra.mxu0 %v909
    %v911 = vand.u32 %v698, 4294901760
    %912 = vmatpush.xpose.msra.mxu0 %v911
    %v913 = vand.u32 %v697, 4294901760
    %914 = vmatpush.xpose.msra.mxu0 %v913
    %v915 = vand.u32 %v696, 4294901760
    %916 = vmatpush.xpose.msra.mxu0 %v915
    %v917 = vand.u32 %v695, 4294901760
    %918 = vmatpush.xpose.msra.mxu0 %v917
    %v919 = vand.u32 %v694, 4294901760
    %920 = vmatpush.xpose.msra.mxu0 %v919
    %v921 = vand.u32 %v693, 4294901760
    %922 = vmatpush.xpose.msra.mxu0 %v921
    %v923 = vand.u32 %v692, 4294901760
    %924 = vmatpush.xpose.msra.mxu0 %v923
    %v925 = vand.u32 %v691, 4294901760
    %926 = vmatpush.xpose.msra.mxu0 %v925
    %927 = vmatmul.f32.gmra.mxu0 0.0
    %v928 = vpop.f32.mrf.mxu0
    %v929 = vadd.f32 %v893, %v928
    %930 = vdwg.mxu0
    %v931 = vand.u32 %v706, 4294901760
    %v932 = vsub.f32 %v706, %v931
    %v933 = vand.u32 %v932, 4294901760
    %934 = vmatpush.xpose.msra.mxu0 %v933
    %v935 = vand.u32 %v705, 4294901760
    %v936 = vsub.f32 %v705, %v935
    %v937 = vand.u32 %v936, 4294901760
    %938 = vmatpush.xpose.msra.mxu0 %v937
    %v939 = vand.u32 %v704, 4294901760
    %v940 = vsub.f32 %v704, %v939
    %v941 = vand.u32 %v940, 4294901760
    %942 = vmatpush.xpose.msra.mxu0 %v941
    %v943 = vand.u32 %v703, 4294901760
    %v944 = vsub.f32 %v703, %v943
    %v945 = vand.u32 %v944, 4294901760
    %946 = vmatpush.xpose.msra.mxu0 %v945
    %v947 = vand.u32 %v702, 4294901760
    %v948 = vsub.f32 %v702, %v947
    %v949 = vand.u32 %v948, 4294901760
    %950 = vmatpush.xpose.msra.mxu0 %v949
    %v951 = vand.u32 %v701, 4294901760
    %v952 = vsub.f32 %v701, %v951
    %v953 = vand.u32 %v952, 4294901760
    %954 = vmatpush.xpose.msra.mxu0 %v953
    %v955 = vand.u32 %v700, 4294901760
    %v956 = vsub.f32 %v700, %v955
    %v957 = vand.u32 %v956, 4294901760
    %958 = vmatpush.xpose.msra.mxu0 %v957
    %v959 = vand.u32 %v699, 4294901760
    %v960 = vsub.f32 %v699, %v959
    %v961 = vand.u32 %v960, 4294901760
    %962 = vmatpush.xpose.msra.mxu0 %v961
    %v963 = vand.u32 %v698, 4294901760
    %v964 = vsub.f32 %v698, %v963
    %v965 = vand.u32 %v964, 4294901760
    %966 = vmatpush.xpose.msra.mxu0 %v965
    %v967 = vand.u32 %v697, 4294901760
    %v968 = vsub.f32 %v697, %v967
    %v969 = vand.u32 %v968, 4294901760
    %970 = vmatpush.xpose.msra.mxu0 %v969
    %v971 = vand.u32 %v696, 4294901760
    %v972 = vsub.f32 %v696, %v971
    %v973 = vand.u32 %v972, 4294901760
    %974 = vmatpush.xpose.msra.mxu0 %v973
    %v975 = vand.u32 %v695, 4294901760
    %v976 = vsub.f32 %v695, %v975
    %v977 = vand.u32 %v976, 4294901760
    %978 = vmatpush.xpose.msra.mxu0 %v977
    %v979 = vand.u32 %v694, 4294901760
    %v980 = vsub.f32 %v694, %v979
    %v981 = vand.u32 %v980, 4294901760
    %982 = vmatpush.xpose.msra.mxu0 %v981
    %v983 = vand.u32 %v693, 4294901760
    %v984 = vsub.f32 %v693, %v983
    %v985 = vand.u32 %v984, 4294901760
    %986 = vmatpush.xpose.msra.mxu0 %v985
    %v987 = vand.u32 %v692, 4294901760
    %v988 = vsub.f32 %v692, %v987
    %v989 = vand.u32 %v988, 4294901760
    %990 = vmatpush.xpose.msra.mxu0 %v989
    %v991 = vand.u32 %v691, 4294901760
    %v992 = vsub.f32 %v691, %v991
    %v993 = vand.u32 %v992, 4294901760
    %994 = vmatpush.xpose.msra.mxu0 %v993
    %995 = vmatmul.f32.gmra.mxu0 1.0
    %v996 = vpop.f32.mrf.mxu0
    %v997 = vadd.f32 %v929, %v996
    %998 = vdwg.mxu0
    %v999 = vand.u32 %v706, 4294901760
    %1000 = vmatpush.xpose.msra.mxu0 %v999
    %v1001 = vand.u32 %v705, 4294901760
    %1002 = vmatpush.xpose.msra.mxu0 %v1001
    %v1003 = vand.u32 %v704, 4294901760
    %1004 = vmatpush.xpose.msra.mxu0 %v1003
    %v1005 = vand.u32 %v703, 4294901760
    %1006 = vmatpush.xpose.msra.mxu0 %v1005
    %v1007 = vand.u32 %v702, 4294901760
    %1008 = vmatpush.xpose.msra.mxu0 %v1007
    %v1009 = vand.u32 %v701, 4294901760
    %1010 = vmatpush.xpose.msra.mxu0 %v1009
    %v1011 = vand.u32 %v700, 4294901760
    %1012 = vmatpush.xpose.msra.mxu0 %v1011
    %v1013 = vand.u32 %v699, 4294901760
    %1014 = vmatpush.xpose.msra.mxu0 %v1013
    %v1015 = vand.u32 %v698, 4294901760
    %1016 = vmatpush.xpose.msra.mxu0 %v1015
    %v1017 = vand.u32 %v697, 4294901760
    %1018 = vmatpush.xpose.msra.mxu0 %v1017
    %v1019 = vand.u32 %v696, 4294901760
    %1020 = vmatpush.xpose.msra.mxu0 %v1019
    %v1021 = vand.u32 %v695, 4294901760
    %1022 = vmatpush.xpose.msra.mxu0 %v1021
    %v1023 = vand.u32 %v694, 4294901760
    %1024 = vmatpush.xpose.msra.mxu0 %v1023
    %v1025 = vand.u32 %v693, 4294901760
    %1026 = vmatpush.xpose.msra.mxu0 %v1025
    %v1027 = vand.u32 %v692, 4294901760
    %1028 = vmatpush.xpose.msra.mxu0 %v1027
    %v1029 = vand.u32 %v691, 4294901760
    %1030 = vmatpush.xpose.msra.mxu0 %v1029
    %1031 = vmatmul.f32.gmra.mxu0 1.0
    %v1032 = vpop.f32.mrf.mxu0
    %v1033 = vadd.f32 %v997, %v1032
    %1034 = vdwg.mxu0
    %v1035 = vld [vmem:[#allocation4] sm:$0xff]
    %v1036 = vld [vmem:[#allocation4 + $0x8] sm:$0xff]
    %v1037 = vld [vmem:[#allocation4 + $0x10] sm:$0xff]
    %v1038 = vld [vmem:[#allocation4 + $0x18] sm:$0xff]
    %1040 = vset.pattern.permute.xlu0 0
    %1041 = vperm.xlu0 %1040, %v1035
    %v1042 = vpop.permute.xlu0 %1041
    %1045 = vset.pattern.permute.xlu0 0
    %1046 = vperm.xlu0 %1045, %v1036
    %v1047 = vpop.permute.xlu0 %1046
    %1050 = vset.pattern.permute.xlu0 0
    %1051 = vperm.xlu0 %1050, %v1037
    %v1052 = vpop.permute.xlu0 %1051
    %1055 = vset.pattern.permute.xlu0 0
    %1056 = vperm.xlu0 %1055, %v1038
    %v1057 = vpop.permute.xlu0 %1056
    %v1059 = vperm.slane %v1033, 0
    %v1060 = vadd.f32 %v1042, %v1059
    %v1061 = vadd.f32 %v1047, %v1059
    %v1062 = vadd.f32 %v1052, %v1059
    %v1063 = vadd.f32 %v1057, %v1059
    %v1064 = vmul.f32 %v661, 2.0
    %v1065 = vmul.f32 %v665, 2.0
    %v1066 = vmul.f32 %v669, 2.0
    %v1067 = vmul.f32 %v673, 2.0
    %v1068 = vsub.f32 %v1060, %v1064
    %v1069 = vsub.f32 %v1061, %v1065
    %v1070 = vsub.f32 %v1062, %v1066
    %v1071 = vsub.f32 %v1063, %v1067
    %v1072 = vsub.f32 %v1068, 1.28e-10
    %v1073 = vsub.f32 %v1069, 1.28e-10
    %v1074 = vsub.f32 %v1070, 1.28e-10
    %v1075 = vsub.f32 %v1071, 1.28e-10
    %v1076 = vmax.f32 %v1072, 0.0
    %v1077 = vmax.f32 %v1073, 0.0
    %v1078 = vmax.f32 %v1074, 0.0
    %v1079 = vmax.f32 %v1075, 0.0
    %v1080 = vrsqrt.pop %v1076
    %v1081 = vmul.f32 %v1080, %v1076
    %v1082 = vmul.f32 %v1081, %v1080
    %v1083 = vmul.f32 0.5, %v1082
    %v1084 = vsub.f32 1.5, %v1083
    %v1085 = vmul.f32 %v1080, %v1084
    %v1086 = vmul.f32 %v1076, %v1085
    %vm1087 = vcmp.eq.f32.partialorder %v1076, inf
    %v1088 = vsel %vm1087, %v1076, %v1086
    %vm1089 = vcmp.eq.f32.partialorder %v1076, 0.0
    %v1090 = vand.u32 %v1076, 2147483648
    %v1091 = vsel %vm1089, %v1090, %v1088
    %v1092 = vrsqrt.pop %v1077
    %v1093 = vmul.f32 %v1092, %v1077
    %v1094 = vmul.f32 %v1093, %v1092
    %v1095 = vmul.f32 0.5, %v1094
    %v1096 = vsub.f32 1.5, %v1095
    %v1097 = vmul.f32 %v1092, %v1096
    %v1098 = vmul.f32 %v1077, %v1097
    %vm1099 = vcmp.eq.f32.partialorder %v1077, inf
    %v1100 = vsel %vm1099, %v1077, %v1098
    %vm1101 = vcmp.eq.f32.partialorder %v1077, 0.0
    %v1102 = vand.u32 %v1077, 2147483648
    %v1103 = vsel %vm1101, %v1102, %v1100
    %v1104 = vrsqrt.pop %v1078
    %v1105 = vmul.f32 %v1104, %v1078
    %v1106 = vmul.f32 %v1105, %v1104
    %v1107 = vmul.f32 0.5, %v1106
    %v1108 = vsub.f32 1.5, %v1107
    %v1109 = vmul.f32 %v1104, %v1108
    %v1110 = vmul.f32 %v1078, %v1109
    %vm1111 = vcmp.eq.f32.partialorder %v1078, inf
    %v1112 = vsel %vm1111, %v1078, %v1110
    %vm1113 = vcmp.eq.f32.partialorder %v1078, 0.0
    %v1114 = vand.u32 %v1078, 2147483648
    %v1115 = vsel %vm1113, %v1114, %v1112
    %v1116 = vrsqrt.pop %v1079
    %v1117 = vmul.f32 %v1116, %v1079
    %v1118 = vmul.f32 %v1117, %v1116
    %v1119 = vmul.f32 0.5, %v1118
    %v1120 = vsub.f32 1.5, %v1119
    %v1121 = vmul.f32 %v1116, %v1120
    %v1122 = vmul.f32 %v1079, %v1121
    %vm1123 = vcmp.eq.f32.partialorder %v1079, inf
    %v1124 = vsel %vm1123, %v1079, %v1122
    %vm1125 = vcmp.eq.f32.partialorder %v1079, 0.0
    %v1126 = vand.u32 %v1079, 2147483648
    %v1127 = vsel %vm1125, %v1126, %v1124
    %v1128 = vld [vmem:[#allocation3] sm:$0xff]
    %v1129 = vld [vmem:[#allocation3 + $0x8] sm:$0xff]
    %v1130 = vld [vmem:[#allocation3 + $0x10] sm:$0xff]
    %v1131 = vld [vmem:[#allocation3 + $0x18] sm:$0xff]
    %1133 = vset.pattern.permute.xlu0 0
    %1134 = vperm.xlu0 %1133, %v1128
    %v1135 = vpop.permute.xlu0 %1134
    %1138 = vset.pattern.permute.xlu0 0
    %1139 = vperm.xlu0 %1138, %v1129
    %v1140 = vpop.permute.xlu0 %1139
    %1143 = vset.pattern.permute.xlu0 0
    %1144 = vperm.xlu0 %1143, %v1130
    %v1145 = vpop.permute.xlu0 %1144
    %1148 = vset.pattern.permute.xlu0 0
    %1149 = vperm.xlu0 %1148, %v1131
    %v1150 = vpop.permute.xlu0 %1149
    %vm1152 = vcmp.gt.f32.partialorder %v661, %v1135
    %vm1153 = vcmp.gt.f32.partialorder %v665, %v1140
    %vm1154 = vcmp.gt.f32.partialorder %v669, %v1145
    %vm1155 = vcmp.gt.f32.partialorder %v673, %v1150
    %v1156 = vsel %vm1152, %v237, 0.0
    %v1157 = vsel %vm1153, %v238, 0.0
    %v1158 = vsel %vm1154, %v239, 0.0
    %v1159 = vsel %vm1155, %v240, 0.0
    %v1160 = vld [vmem:[#allocation2] sm:$0xff]
    %v1161 = vld [vmem:[#allocation2 + $0x8] sm:$0xff]
    %v1162 = vld [vmem:[#allocation2 + $0x10] sm:$0xff]
    %v1163 = vld [vmem:[#allocation2 + $0x18] sm:$0xff]
    %1165 = vset.pattern.permute.xlu0 0
    %1166 = vperm.xlu0 %1165, %v1160
    %v1167 = vpop.permute.xlu0 %1166
    %1170 = vset.pattern.permute.xlu0 0
    %1171 = vperm.xlu0 %1170, %v1161
    %v1172 = vpop.permute.xlu0 %1171
    %1175 = vset.pattern.permute.xlu0 0
    %1176 = vperm.xlu0 %1175, %v1162
    %v1177 = vpop.permute.xlu0 %1176
    %1180 = vset.pattern.permute.xlu0 0
    %1181 = vperm.xlu0 %1180, %v1163
    %v1182 = vpop.permute.xlu0 %1181
    %v1184 = vsub.f32 %v1167, %v1091
    %v1185 = vsub.f32 %v1172, %v1103
    %v1186 = vsub.f32 %v1177, %v1115
    %v1187 = vsub.f32 %v1182, %v1127
    %v1188 = vmax.f32 %v1184, 0.0
    %v1189 = vmax.f32 %v1185, 0.0
    %v1190 = vmax.f32 %v1186, 0.0
    %v1191 = vmax.f32 %v1187, 0.0
    %v1192 = vld [vmem:[#allocation5] sm:$0xff]
    %v1193 = vld [vmem:[#allocation5 + $0x8] sm:$0xff]
    %v1194 = vld [vmem:[#allocation5 + $0x10] sm:$0xff]
    %v1195 = vld [vmem:[#allocation5 + $0x18] sm:$0xff]
    %v1196 = vmul.f32 %v1156, %v1188
    %v1197 = vmul.f32 %v1157, %v1189
    %v1198 = vmul.f32 %v1158, %v1190
    %v1199 = vmul.f32 %v1159, %v1191
    %1200 = vadd.xlane.f32.xlu0 %v1196
    %v1201 = vpop.xlane.xlu0 %1200
    %1202 = vadd.xlane.f32.xlu0 %v1197
    %v1203 = vpop.xlane.xlu0 %1202
    %1204 = vadd.xlane.f32.xlu0 %v1198
    %v1205 = vpop.xlane.xlu0 %1204
    %1206 = vadd.xlane.f32.xlu0 %v1199
    %v1207 = vpop.xlane.xlu0 %1206
    %v1208 = vadd.f32 %v1192, %v1201
    %v1209 = vadd.f32 %v1193, %v1203
    %v1210 = vadd.f32 %v1194, %v1205
    %v1211 = vadd.f32 %v1195, %v1207
    %vm1212 = vcmask 7168
    %1213 = vst.msk [vmem:[#allocation5] sm:$0xff] %vm1212, %v1208
    %1214 = vst.msk [vmem:[#allocation5 + $0x8] sm:$0xff] %vm1212, %v1209
    %1215 = vst.msk [vmem:[#allocation5 + $0x10] sm:$0xff] %vm1212, %v1210
    %1216 = vst.msk [vmem:[#allocation5 + $0x18] sm:$0xff] %vm1212, %v1211
    %v1217 = vld [vmem:[#allocation6] sm:$0xff]
    %v1218 = vld [vmem:[#allocation6 + $0x8] sm:$0xff]
    %v1219 = vld [vmem:[#allocation6 + $0x10] sm:$0xff]
    %v1220 = vld [vmem:[#allocation6 + $0x18] sm:$0xff]
    %1221 = vadd.xlane.f32.xlu0 %v1156
    %v1222 = vpop.xlane.xlu0 %1221
    %1223 = vadd.xlane.f32.xlu0 %v1157
    %v1224 = vpop.xlane.xlu0 %1223
    %1225 = vadd.xlane.f32.xlu0 %v1158
    %v1226 = vpop.xlane.xlu0 %1225
    %1227 = vadd.xlane.f32.xlu0 %v1159
    %v1228 = vpop.xlane.xlu0 %1227
    %v1229 = vadd.f32 %v1217, %v1222
    %v1230 = vadd.f32 %v1218, %v1224
    %v1231 = vadd.f32 %v1219, %v1226
    %v1232 = vadd.f32 %v1220, %v1228
    %1233 = vst.msk [vmem:[#allocation6] sm:$0xff] %vm1212, %v1229
    %1234 = vst.msk [vmem:[#allocation6 + $0x8] sm:$0xff] %vm1212, %v1230
    %1235 = vst.msk [vmem:[#allocation6 + $0x10] sm:$0xff] %vm1212, %v1231
    %1236 = vst.msk [vmem:[#allocation6 + $0x18] sm:$0xff] %vm1212, %v1232
    // Predicated region
    $region38: #{tpu_custom_call.1} parent=1 // pred_check
      %p1237 = pneg %p83
    $region39: #{tpu_custom_call.1} parent=1 // pred_check_branch
      %1239 = sbr.rel (%p1237) target = $region41
    $region40: #{tpu_custom_call.1} parent=1 // pred_region
      %v1240 = vld [vmem:[#allocation5] sm:$0xff]
      %v1241 = vld [vmem:[#allocation5 + $0x8] sm:$0xff]
      %v1242 = vld [vmem:[#allocation5 + $0x10] sm:$0xff]
      %v1243 = vld [vmem:[#allocation5 + $0x18] sm:$0xff]
      %v1244 = vsel %vm1212, %v1240, 0.0
      %v1245 = vsel %vm1212, %v1241, 0.0
      %v1246 = vadd.f32 %v1244, %v1245
      %v1247 = vsel %vm1212, %v1242, 0.0
      %v1248 = vadd.f32 %v1246, %v1247
      %v1249 = vsel %vm1212, %v1243, 0.0
      %v1250 = vadd.f32 %v1248, %v1249
      %1251 = vadd.xlane.f32.xlu0 %v1250
      %v1252 = vpop.xlane.xlu0 %1251
      %v1253 = vrot.slane %v1252, 4
      %v1254 = vadd.f32 %v1252, %v1253
      %v1255 = vrot.slane %v1254, 2
      %v1256 = vadd.f32 %v1254, %v1255
      %v1257 = vrot.slane %v1256, 1
      %v1258 = vadd.f32 %v1256, %v1257
      %s1259 = vtos %v1258
      %v1260 = vld [vmem:[#allocation6] sm:$0xff]
      %v1261 = vld [vmem:[#allocation6 + $0x8] sm:$0xff]
      %v1262 = vld [vmem:[#allocation6 + $0x10] sm:$0xff]
      %v1263 = vld [vmem:[#allocation6 + $0x18] sm:$0xff]
      %v1264 = vsel %vm1212, %v1260, 0.0
      %v1265 = vsel %vm1212, %v1261, 0.0
      %v1266 = vadd.f32 %v1264, %v1265
      %v1267 = vsel %vm1212, %v1262, 0.0
      %v1268 = vadd.f32 %v1266, %v1267
      %v1269 = vsel %vm1212, %v1263, 0.0
      %v1270 = vadd.f32 %v1268, %v1269
      %1271 = vadd.xlane.f32.xlu0 %v1270
      %v1272 = vpop.xlane.xlu0 %1271
      %v1273 = vrot.slane %v1272, 4
      %v1274 = vadd.f32 %v1272, %v1273
      %v1275 = vrot.slane %v1274, 2
      %v1276 = vadd.f32 %v1274, %v1275
      %v1277 = vrot.slane %v1276, 1
      %v1278 = vadd.f32 %v1276, %v1277
      %s1279 = vtos %v1278
      %p1280 = scmp.gt.f32.partialorder %s1279, 0.0
      %v1281 = vstv %s1279
      %v1282 = vrcp.pop %v1281
      %v1283 = vmul.f32 %v1281, %v1282
      %v1284 = vsub.f32 1.0, %v1283
      %v1285 = vmul.f32 %v1282, %v1284
      %v1286 = vadd.f32 %v1282, %v1285
      %vm1287 = vweird.f32 %v1281
      %vm1288 = vweird.f32 %v1282
      %vm1289 = vmor %vm1287, %vm1288
      %v1290 = vsel %vm1289, %v1282, %v1286
      %v1291 = vand.u32 2147483647, %v1281
      %vm1292 = vcmp.eq.f32.partialorder %v1291, 8.507059e+37
      %v1293 = vand.u32 %v1281, 2147483648
      %v1294 = vor.u32 1.1754944e-38, %v1293
      %v1295 = vsel %vm1292, %v1294, %v1290
      %s1296 = vtos %v1295
      %s1297 = smul.f32 %s1259, %s1296
      %s1298 = scalar_select %p1280, %s1297, 0.0
      %s1299 = scalar_lea.smem [#allocation15], 0
      %1300 = sst [smem:[%s1299]] %s1298
    $region41: #{tpu_custom_call.1} parent=1 // pred_fallthru
      _
    // Predicated region
    $region42: #{tpu_custom_call.1} parent=1 // pred_check
      _
    $region43: #{tpu_custom_call.1} parent=1 // pred_check_branch
      %1302 = sbr.rel (0) target = $region45
    $region44: #{tpu_custom_call.1} parent=1 // pred_region
      %1304 = vsyncadd [#allocation9], 0
      %s1306 = sshll.u32 %s4, 4
      %s1307 = int_to_ptr.hbm [resolvable:$true] %s1306
      %1309 = dma.smem_to_hbm [#allocation15], 16, %s1307, [#allocation9]
    $region45: #{tpu_custom_call.1} parent=1 // pred_fallthru
      _
    // Predicated region
    $region46: #{tpu_custom_call.1} parent=1 // pred_check
      _
    $region47: #{tpu_custom_call.1} parent=1 // pred_check_branch
      %1311 = sbr.rel (0) target = $region49
    $region48: #{tpu_custom_call.1} parent=1 // pred_region
      %1313 = dma.done [#allocation9], 16
    $region49: #{tpu_custom_call.1} parent=1 // pred_fallthru
      _
    %1314 = sfence
    %1315 = vsyncpa [#allocation8], 1
    %1316 = vsyncpa [#allocation11], 1
    %1317 = vsyncpa [#allocation14], 1
    %1318 = vsyncpa [#allocation9], 1

</llo_original>
